<compile_context>
chip_gen: v7x
topology: tpu7x:2x2x1
jax: 0.10.0
libtpu: 0.0.40
codegen_flags: <defaults>
</compile_context>

<pallas_src>
import jax
import jax.numpy as jnp
from jax import lax
from jax.experimental import pallas as pl
from jax.experimental.pallas import tpu as pltpu


def _silu(x):
    """Reference-side SiLU."""
    return x * jax.nn.sigmoid(x)


def ghost_bottleneck(x_nchw, params):
    """GhostBottleneck(c1, c2, k=3, s=1) forward.  x_nchw: (N, C1, H, W)."""
    (w1, s1, b1, wd1, sd1, bd1, w2, s2, b2, wd2, sd2, bd2) = params
    N, C1, H, W = x_nchw.shape
    cg1 = w1.shape[1]                 # GhostConv1 hidden = c2 // 4
    cg2 = w2.shape[1]                 # GhostConv2 hidden = c2 // 2
    c2 = 2 * cg2
    assert C1 == c2, "identity shortcut (s=1) requires c1 == c2"
    assert w2.shape[0] == 2 * cg1

    L = H * W                                        # pixels on the lane axis
    # Margin so every (dy, dx) tap is an in-bounds static lane slice; rounded
    # to a multiple of 128 so interior loads/stores stay vreg-aligned.
    M = ((2 * W + 2 + 127) // 128) * 128
    LP = L + 2 * M

    # NCHW -> (N, C, H*W): free reshape; channels -> sublanes, pixels -> lanes.
    x = x_nchw.reshape(N, C1, L)

    # Fold BN scales into the weights host-side (numerically exact, free).
    s1v, b1v = s1.reshape(-1), b1.reshape(-1)
    sd1v, bd1v = sd1.reshape(-1), bd1.reshape(-1)
    s2v, b2v = s2.reshape(-1), b2.reshape(-1)
    sd2v, bd2v = sd2.reshape(-1), bd2.reshape(-1)

    # 1x1 conv weights transposed to (c_out, c_in) for y = W^T @ x; rows scaled
    # by the folded BN scale of their output channel.
    w1t = jnp.transpose(w1) * s1v[:, None]            # (cg1, C1)
    w2t = jnp.transpose(w2) * s2v[:, None]            # (cg2, 2*cg1)
    w2at = w2t[:, :cg1]                               # multiplies y1
    w2bt = w2t[:, cg1:]                               # multiplies y2

    # depthwise 5x5 weights as (C, 25) rows, tap index k = dy*5 + dx, BN-scaled.
    wd1c = jnp.transpose(wd1.reshape(25, cg1)) * sd1v[:, None]   # (cg1, 25)
    wd2c = jnp.transpose(wd2.reshape(25, cg2)) * sd2v[:, None]   # (cg2, 25)

    # remaining per-channel biases, packed as columns [:,0]=after 1x1, [:,1]=after dw
    bias1 = jnp.stack([b1v, bd1v], axis=1)            # (cg1, 2)
    bias2 = jnp.stack([b2v, bd2v], axis=1)            # (cg2, 2)

    # W-direction validity masks for the flattened lane shifts (one row per dx
    # offset in [-2, 2]); the H direction is handled by the zero margins.
    wpos = jnp.arange(L, dtype=jnp.int32) % W
    wmask = jnp.stack(
        [((wpos + d >= 0) & (wpos + d < W)).astype(jnp.float32)
         for d in range(-2, 3)], axis=0)              # (5, L)

    def kernel(x_ref, w1t_ref, b1_ref, wd1_ref, w2at_ref, w2bt_ref, b2_ref,
               wd2_ref, wm_ref, o_ref, g_pad, z_pad):
        f32 = jnp.float32
        wm = wm_ref[...]

        def silu(v):
            # exp and approximate reciprocal both run on the EUP slot.
            return v * pl.reciprocal(1.0 + jnp.exp(-v), approx=True)

        # Zero only the shift margins (interior is fully rewritten each step).
        # Done every step: scratch is per-core and the parallel grid may be
        # split across TensorCores, so a program_id==0 guard is not safe.
        g_pad[:, :M] = jnp.zeros((cg1, M), f32)
        g_pad[:, M + L:] = jnp.zeros((cg1, M), f32)
        z_pad[:, :M] = jnp.zeros((cg2, M), f32)
        z_pad[:, M + L:] = jnp.zeros((cg2, M), f32)

        def dw5x5(pad_ref, wd):
            """5x5 depthwise conv (stride 1, pad 2) of the (C, L) image stored
            at pad_ref[:, M:M+L].  Taps are grouped by dx so the W-border mask
            is applied once per column offset (dx == 2 needs none), and each
            group's accumulator is seeded from its first tap (no zeros)."""
            acc = None
            for dx in range(5):
                part = None
                for dy in range(5):
                    s = (dy - 2) * W + (dx - 2)
                    k = dy * 5 + dx
                    t = pad_ref[:, M + s:M + s + L] * wd[:, k:k + 1]
                    part = t if part is None else part + t
                if dx != 2:                      # zero column shift: no mask
                    part = part * wm[dx:dx + 1, :]
                acc = part if acc is None else acc + part
            return acc

        xf = x_ref[0].astype(f32)     # read x once: feeds the 1x1 matmul and
        b1c = b1_ref[...]             # both halves of the identity shortcut.
        b2c = b2_ref[...]

        # ---- GhostConv #1 (act = SiLU); BN scale pre-folded into weights ----
        y1 = silu(jnp.dot(w1t_ref[...], xf, preferred_element_type=f32)
                  + b1c[:, 0:1])                                      # (cg1, L)
        g_pad[:, M:M + L] = y1
        # First half of the GhostConv#2 matmul issues now so the (otherwise
        # idle) MXU overlaps the VALU-bound depthwise loop below.
        z1a = jnp.dot(w2at_ref[...], y1, preferred_element_type=f32)  # (cg2, L)
        y2 = silu(dw5x5(g_pad, wd1_ref[...]) + b1c[:, 1:2])           # (cg1, L)

        # ---- GhostConv #2 (act = False) ----
        z1 = (z1a + jnp.dot(w2bt_ref[...], y2, preferred_element_type=f32)
              + b2c[:, 0:1])                                          # (cg2, L)
        z_pad[:, M:M + L] = z1

        # identity shortcut, first half of the channel concat (256-lane store):
        o_ref[0, :cg2, :] = (z1 + xf[:cg2, :]).astype(o_ref.dtype)

        z2 = dw5x5(z_pad, wd2_ref[...]) + b2c[:, 1:2]                 # (cg2, L)
        o_ref[0, cg2:, :] = (z2 + xf[cg2:, :]).astype(o_ref.dtype)

    def full(a):
        return pl.BlockSpec(a.shape, lambda b, _nd=a.ndim: (0,) * _nd)

    in_specs = [pl.BlockSpec((1, C1, L), lambda b: (b, 0, 0)),
                full(w1t), full(bias1), full(wd1c),
                full(w2at), full(w2bt), full(bias2), full(wd2c), full(wmask)]

    # TODO(synk): for N == 1 inference on v7x, add a parallel row-band (or lane
    # half) grid axis with a 2-row halo so both TensorCores get work, and tile
    # the lane axis for YOLO-scale feature maps so blocks + scratch stay within
    # the 64 MiB VMEM budget.
    out = pl.pallas_call(
        kernel,
        grid=(N,),
        in_specs=in_specs,
        out_specs=pl.BlockSpec((1, c2, L), lambda b: (b, 0, 0)),
        out_shape=jax.ShapeDtypeStruct((N, c2, L), x.dtype),
        scratch_shapes=[pltpu.VMEM((cg1, LP), jnp.float32),
                        pltpu.VMEM((cg2, LP), jnp.float32)],
        compiler_params=pltpu.CompilerParams(
            dimension_semantics=("parallel",),
            vmem_limit_bytes=32 * 1024 * 1024),
    )(x, w1t, bias1, wd1c, w2at, w2bt, bias2, wd2c, wmask)

    return out.reshape(N, c2, H, W)                  # (N, C2, H*W) -> NCHW


# ------------------------- parameter construction ---------------------------
def init_params(key, c1, c2, eps=1e-3):
    """Deterministic synthetic weights; BN folded into (scale, bias)."""
    c_ = c2 // 2          # GhostBottleneck hidden
    cg1 = c_ // 2         # GhostConv1 hidden
    cg2 = c2 // 2         # GhostConv2 hidden
    keys = iter(jax.random.split(key, 20))

    def bn_fold(cout):
        gamma = 1.0 + 0.1 * jax.random.normal(next(keys), (cout,), jnp.float32)
        beta = 0.1 * jax.random.normal(next(keys), (cout,), jnp.float32)
        mean = 0.1 * jax.random.normal(next(keys), (cout,), jnp.float32)
        var = jnp.abs(jax.random.normal(next(keys), (cout,), jnp.float32)) + 0.5
        scale = gamma / jnp.sqrt(var + eps)
        bias = beta - mean * scale
        return scale[None, :], bias[None, :]

    w1 = 0.2 * jax.random.normal(next(keys), (c1, cg1), jnp.float32)     # 1x1
    s1, b1 = bn_fold(cg1)
    wd1 = 0.2 * jax.random.normal(next(keys), (5, 5, cg1), jnp.float32)  # dw 5x5
    sd1, bd1 = bn_fold(cg1)
    w2 = 0.2 * jax.random.normal(next(keys), (c_, cg2), jnp.float32)     # 1x1
    s2, b2 = bn_fold(cg2)
    wd2 = 0.2 * jax.random.normal(next(keys), (5, 5, cg2), jnp.float32)  # dw 5x5
    sd2, bd2 = bn_fold(cg2)
    return (w1, s1, b1, wd1, sd1, bd1, w2, s2, b2, wd2, sd2, bd2)


# ------------------------------ plain-JAX reference -------------------------
def ghost_bottleneck_ref(x_nchw, params):
    (w1, s1, b1, wd1, sd1, bd1, w2, s2, b2, wd2, sd2, bd2) = params
    x = jnp.transpose(x_nchw, (0, 2, 3, 1))

    def conv1x1_bn(inp, w, s, b, act):
        y = lax.conv_general_dilated(inp, w[None, None, :, :], (1, 1), 'VALID',
                                     dimension_numbers=('NHWC', 'HWIO', 'NHWC'))
        y = y * s + b
        return _silu(y) if act else y

    def dw5x5_bn(inp, w, s, b, act):
        C = inp.shape[-1]
        y = lax.conv_general_dilated(inp, w[:, :, None, :], (1, 1),
                                     ((2, 2), (2, 2)),
                                     feature_group_count=C,
                                     dimension_numbers=('NHWC', 'HWIO', 'NHWC'))
        y = y * s + b
        return _silu(y) if act else y

    y1 = conv1x1_bn(x, w1, s1, b1, True)
    y2 = dw5x5_bn(y1, wd1, sd1, bd1, True)
    g1 = jnp.concatenate([y1, y2], -1)
    z1 = conv1x1_bn(g1, w2, s2, b2, False)
    z2 = dw5x5_bn(z1, wd2, sd2, bd2, False)
    out = jnp.concatenate([z1, z2], -1) + x
    return jnp.transpose(out, (0, 3, 1, 2))


if __name__ == "__main__":
    c1 = c2 = 16
    N, H, W = 2, 16, 16

    key = jax.random.PRNGKey(0)
    kx, kp = jax.random.split(key)
    x = jax.random.normal(kx, (N, c1, H, W), jnp.float32)   # PyTorch NCHW input
    params = init_params(kp, c1, c2)

    out = ghost_bottleneck(x, params)
    jax.block_until_ready(out)

    ref = ghost_bottleneck_ref(x, params)
    err = float(jnp.max(jnp.abs(out - ref)))
    assert out.shape == (N, c2, H, W), out.shape
    # Tolerance sized for the approximate EUP reciprocal used by the in-kernel
    # SiLU (with approx=False the kernel matches the reference to < 5e-4).
    assert err < 5e-3, f"mismatch vs reference: max abs err = {err}"
    print("KERNEL_OK")
</pallas_src>

<mosaic_0001>
module attributes {stable_mosaic.version = 11 : i64} {
  func.func @kernel(%arg0: i32, %arg1: memref<1x16x256xf32, #tpu.memory_space<vmem>>, %arg2: memref<4x16xf32, #tpu.memory_space<vmem>>, %arg3: memref<4x2xf32, #tpu.memory_space<vmem>>, %arg4: memref<4x25xf32, #tpu.memory_space<vmem>>, %arg5: memref<8x4xf32, #tpu.memory_space<vmem>>, %arg6: memref<8x4xf32, #tpu.memory_space<vmem>>, %arg7: memref<8x2xf32, #tpu.memory_space<vmem>>, %arg8: memref<8x25xf32, #tpu.memory_space<vmem>>, %arg9: memref<5x256xf32, #tpu.memory_space<vmem>>, %arg10: memref<1x16x256xf32, #tpu.memory_space<vmem>>, %arg11: memref<4x512xf32, #tpu.memory_space<vmem>>, %arg12: memref<8x512xf32, #tpu.memory_space<vmem>>) attributes {dimension_semantics = [#tpu.dimension_semantics<parallel>], iteration_bounds = array<i64: 2>, scalar_prefetch = 0 : i64, scratch_operands = 2 : i64, tpu.core_type = #tpu.core_type<tc>, window_params = [{transform_indices = @transform_0, window_bounds = array<i64: 1, 16, 256>}, {pipeline_mode = #tpu.pipeline_mode<synchronous>, transform_indices = @transform_1, window_bounds = array<i64: 4, 16>}, {pipeline_mode = #tpu.pipeline_mode<synchronous>, transform_indices = @transform_2, window_bounds = array<i64: 4, 2>}, {pipeline_mode = #tpu.pipeline_mode<synchronous>, transform_indices = @transform_3, window_bounds = array<i64: 4, 25>}, {pipeline_mode = #tpu.pipeline_mode<synchronous>, transform_indices = @transform_4, window_bounds = array<i64: 8, 4>}, {pipeline_mode = #tpu.pipeline_mode<synchronous>, transform_indices = @transform_5, window_bounds = array<i64: 8, 4>}, {pipeline_mode = #tpu.pipeline_mode<synchronous>, transform_indices = @transform_6, window_bounds = array<i64: 8, 2>}, {pipeline_mode = #tpu.pipeline_mode<synchronous>, transform_indices = @transform_7, window_bounds = array<i64: 8, 25>}, {pipeline_mode = #tpu.pipeline_mode<synchronous>, transform_indices = @transform_8, window_bounds = array<i64: 5, 256>}, {transform_indices = @transform_9, window_bounds = array<i64: 1, 16, 256>}]} {
    %c0 = arith.constant 0 : index
    %c0_0 = arith.constant 0 : index
    %0 = vector.load %arg9[%c0, %c0_0] : memref<5x256xf32, #tpu.memory_space<vmem>>, vector<5x256xf32>
    %cst = arith.constant 0.000000e+00 : f32
    %1 = vector.broadcast %cst : f32 to vector<4x128xf32>
    %c0_1 = arith.constant 0 : index
    %c0_2 = arith.constant 0 : index
    %2 = vector.load %arg11[%c0_1, %c0_2] : memref<4x512xf32, #tpu.memory_space<vmem>>, vector<4x128xf32>
    tpu.vector_store %arg11[%c0_1, %c0_2], %1 {strides = array<i32>} : memref<4x512xf32, #tpu.memory_space<vmem>>, vector<4x128xf32>,
    %cst_3 = arith.constant 0.000000e+00 : f32
    %3 = vector.broadcast %cst_3 : f32 to vector<4x128xf32>
    %c0_4 = arith.constant 0 : index
    %c384 = arith.constant 384 : index
    %4 = vector.load %arg11[%c0_4, %c384] : memref<4x512xf32, #tpu.memory_space<vmem>>, vector<4x128xf32>
    tpu.vector_store %arg11[%c0_4, %c384], %3 {strides = array<i32>} : memref<4x512xf32, #tpu.memory_space<vmem>>, vector<4x128xf32>,
    %cst_5 = arith.constant 0.000000e+00 : f32
    %5 = vector.broadcast %cst_5 : f32 to vector<8x128xf32>
    %c0_6 = arith.constant 0 : index
    %c0_7 = arith.constant 0 : index
    %6 = vector.load %arg12[%c0_6, %c0_7] : memref<8x512xf32, #tpu.memory_space<vmem>>, vector<8x128xf32>
    tpu.vector_store %arg12[%c0_6, %c0_7], %5 {strides = array<i32>} : memref<8x512xf32, #tpu.memory_space<vmem>>, vector<8x128xf32>,
    %cst_8 = arith.constant 0.000000e+00 : f32
    %7 = vector.broadcast %cst_8 : f32 to vector<8x128xf32>
    %c0_9 = arith.constant 0 : index
    %c384_10 = arith.constant 384 : index
    %8 = vector.load %arg12[%c0_9, %c384_10] : memref<8x512xf32, #tpu.memory_space<vmem>>, vector<8x128xf32>
    tpu.vector_store %arg12[%c0_9, %c384_10], %7 {strides = array<i32>} : memref<8x512xf32, #tpu.memory_space<vmem>>, vector<8x128xf32>,
    %c0_11 = arith.constant 0 : index
    %c0_12 = arith.constant 0 : index
    %c0_13 = arith.constant 0 : index
    %9 = vector.load %arg1[%c0_11, %c0_12, %c0_13] : memref<1x16x256xf32, #tpu.memory_space<vmem>>, vector<1x16x256xf32>
    %10 = vector.shape_cast %9 : vector<1x16x256xf32> to vector<16x256xf32>
    %c0_14 = arith.constant 0 : index
    %c0_15 = arith.constant 0 : index
    %11 = vector.load %arg3[%c0_14, %c0_15] : memref<4x2xf32, #tpu.memory_space<vmem>>, vector<4x2xf32>
    %c0_16 = arith.constant 0 : index
    %c0_17 = arith.constant 0 : index
    %12 = vector.load %arg7[%c0_16, %c0_17] : memref<8x2xf32, #tpu.memory_space<vmem>>, vector<8x2xf32>
    %c0_18 = arith.constant 0 : index
    %c0_19 = arith.constant 0 : index
    %13 = vector.load %arg2[%c0_18, %c0_19] : memref<4x16xf32, #tpu.memory_space<vmem>>, vector<4x16xf32>
    %cst_20 = arith.constant dense<0.000000e+00> : vector<4x256xf32>
    %14 = tpu.matmul %13, %10, %cst_20 {dimension_numbers = #tpu.dot_dimension_numbers<[1], [0], [0], [1], [0, 0, 1, 1], [], []>} : vector<4x16xf32>, vector<16x256xf32>, vector<4x256xf32> -> vector<4x256xf32>
    %15 = vector.extract_strided_slice %11 {offsets = [0, 0], sizes = [4, 1], strides = [1, 1]} : vector<4x2xf32> to vector<4x1xf32>
    %16 = vector.broadcast %15 : vector<4x1xf32> to vector<4x256xf32>
    %17 = arith.addf %14, %16 : vector<4x256xf32>
    %cst_21 = arith.constant 0.000000e+00 : f32
    %18 = vector.broadcast %cst_21 : f32 to vector<4x256xf32>
    %19 = arith.subf %18, %17 : vector<4x256xf32>
    %20 = math.exp %19 : vector<4x256xf32>
    %cst_22 = arith.constant 1.000000e+00 : f32
    %21 = vector.broadcast %cst_22 : f32 to vector<4x256xf32>
    %22 = arith.addf %21, %20 : vector<4x256xf32>
    %23 = tpu.reciprocal %22 {approx = true} : vector<4x256xf32> -> vector<4x256xf32>
    %24 = arith.mulf %17, %23 : vector<4x256xf32>
    %c0_23 = arith.constant 0 : index
    %c128 = arith.constant 128 : index
    %25 = vector.load %arg11[%c0_23, %c128] : memref<4x512xf32, #tpu.memory_space<vmem>>, vector<4x256xf32>
    tpu.vector_store %arg11[%c0_23, %c128], %24 {strides = array<i32>} : memref<4x512xf32, #tpu.memory_space<vmem>>, vector<4x256xf32>,
    %c0_24 = arith.constant 0 : index
    %c0_25 = arith.constant 0 : index
    %26 = vector.load %arg5[%c0_24, %c0_25] : memref<8x4xf32, #tpu.memory_space<vmem>>, vector<8x4xf32>
    %cst_26 = arith.constant dense<0.000000e+00> : vector<8x256xf32>
    %27 = tpu.matmul %26, %24, %cst_26 {dimension_numbers = #tpu.dot_dimension_numbers<[1], [0], [0], [1], [0, 0, 1, 1], [], []>} : vector<8x4xf32>, vector<4x256xf32>, vector<8x256xf32> -> vector<8x256xf32>
    %c0_27 = arith.constant 0 : index
    %c0_28 = arith.constant 0 : index
    %28 = vector.load %arg4[%c0_27, %c0_28] : memref<4x25xf32, #tpu.memory_space<vmem>>, vector<4x25xf32>
    %c0_29 = arith.constant 0 : index
    %c94 = arith.constant 94 : index
    %29 = vector.load %arg11[%c0_29, %c94] : memref<4x512xf32, #tpu.memory_space<vmem>>, vector<4x256xf32>
    %30 = vector.extract_strided_slice %28 {offsets = [0, 0], sizes = [4, 1], strides = [1, 1]} : vector<4x25xf32> to vector<4x1xf32>
    %31 = vector.broadcast %30 : vector<4x1xf32> to vector<4x256xf32>
    %32 = arith.mulf %29, %31 : vector<4x256xf32>
    %c0_30 = arith.constant 0 : index
    %c110 = arith.constant 110 : index
    %33 = vector.load %arg11[%c0_30, %c110] : memref<4x512xf32, #tpu.memory_space<vmem>>, vector<4x256xf32>
    %34 = vector.extract_strided_slice %28 {offsets = [0, 5], sizes = [4, 1], strides = [1, 1]} : vector<4x25xf32> to vector<4x1xf32>
    %35 = vector.broadcast %34 : vector<4x1xf32> to vector<4x256xf32>
    %36 = arith.mulf %33, %35 : vector<4x256xf32>
    %37 = arith.addf %32, %36 : vector<4x256xf32>
    %c0_31 = arith.constant 0 : index
    %c126 = arith.constant 126 : index
    %38 = vector.load %arg11[%c0_31, %c126] : memref<4x512xf32, #tpu.memory_space<vmem>>, vector<4x256xf32>
    %39 = vector.extract_strided_slice %28 {offsets = [0, 10], sizes = [4, 1], strides = [1, 1]} : vector<4x25xf32> to vector<4x1xf32>
    %40 = vector.broadcast %39 : vector<4x1xf32> to vector<4x256xf32>
    %41 = arith.mulf %38, %40 : vector<4x256xf32>
    %42 = arith.addf %37, %41 : vector<4x256xf32>
    %c0_32 = arith.constant 0 : index
    %c142 = arith.constant 142 : index
    %43 = vector.load %arg11[%c0_32, %c142] : memref<4x512xf32, #tpu.memory_space<vmem>>, vector<4x256xf32>
    %44 = vector.extract_strided_slice %28 {offsets = [0, 15], sizes = [4, 1], strides = [1, 1]} : vector<4x25xf32> to vector<4x1xf32>
    %45 = vector.broadcast %44 : vector<4x1xf32> to vector<4x256xf32>
    %46 = arith.mulf %43, %45 : vector<4x256xf32>
    %47 = arith.addf %42, %46 : vector<4x256xf32>
    %c0_33 = arith.constant 0 : index
    %c158 = arith.constant 158 : index
    %48 = vector.load %arg11[%c0_33, %c158] : memref<4x512xf32, #tpu.memory_space<vmem>>, vector<4x256xf32>
    %49 = vector.extract_strided_slice %28 {offsets = [0, 20], sizes = [4, 1], strides = [1, 1]} : vector<4x25xf32> to vector<4x1xf32>
    %50 = vector.broadcast %49 : vector<4x1xf32> to vector<4x256xf32>
    %51 = arith.mulf %48, %50 : vector<4x256xf32>
    %52 = arith.addf %47, %51 : vector<4x256xf32>
    %53 = vector.extract_strided_slice %0 {offsets = [0, 0], sizes = [1, 256], strides = [1, 1]} : vector<5x256xf32> to vector<1x256xf32>
    %54 = vector.broadcast %53 : vector<1x256xf32> to vector<4x256xf32>
    %55 = arith.mulf %52, %54 : vector<4x256xf32>
    %c0_34 = arith.constant 0 : index
    %c95 = arith.constant 95 : index
    %56 = vector.load %arg11[%c0_34, %c95] : memref<4x512xf32, #tpu.memory_space<vmem>>, vector<4x256xf32>
    %57 = vector.extract_strided_slice %28 {offsets = [0, 1], sizes = [4, 1], strides = [1, 1]} : vector<4x25xf32> to vector<4x1xf32>
    %58 = vector.broadcast %57 : vector<4x1xf32> to vector<4x256xf32>
    %59 = arith.mulf %56, %58 : vector<4x256xf32>
    %c0_35 = arith.constant 0 : index
    %c111 = arith.constant 111 : index
    %60 = vector.load %arg11[%c0_35, %c111] : memref<4x512xf32, #tpu.memory_space<vmem>>, vector<4x256xf32>
    %61 = vector.extract_strided_slice %28 {offsets = [0, 6], sizes = [4, 1], strides = [1, 1]} : vector<4x25xf32> to vector<4x1xf32>
    %62 = vector.broadcast %61 : vector<4x1xf32> to vector<4x256xf32>
    %63 = arith.mulf %60, %62 : vector<4x256xf32>
    %64 = arith.addf %59, %63 : vector<4x256xf32>
    %c0_36 = arith.constant 0 : index
    %c127 = arith.constant 127 : index
    %65 = vector.load %arg11[%c0_36, %c127] : memref<4x512xf32, #tpu.memory_space<vmem>>, vector<4x256xf32>
    %66 = vector.extract_strided_slice %28 {offsets = [0, 11], sizes = [4, 1], strides = [1, 1]} : vector<4x25xf32> to vector<4x1xf32>
    %67 = vector.broadcast %66 : vector<4x1xf32> to vector<4x256xf32>
    %68 = arith.mulf %65, %67 : vector<4x256xf32>
    %69 = arith.addf %64, %68 : vector<4x256xf32>
    %c0_37 = arith.constant 0 : index
    %c143 = arith.constant 143 : index
    %70 = vector.load %arg11[%c0_37, %c143] : memref<4x512xf32, #tpu.memory_space<vmem>>, vector<4x256xf32>
    %71 = vector.extract_strided_slice %28 {offsets = [0, 16], sizes = [4, 1], strides = [1, 1]} : vector<4x25xf32> to vector<4x1xf32>
    %72 = vector.broadcast %71 : vector<4x1xf32> to vector<4x256xf32>
    %73 = arith.mulf %70, %72 : vector<4x256xf32>
    %74 = arith.addf %69, %73 : vector<4x256xf32>
    %c0_38 = arith.constant 0 : index
    %c159 = arith.constant 159 : index
    %75 = vector.load %arg11[%c0_38, %c159] : memref<4x512xf32, #tpu.memory_space<vmem>>, vector<4x256xf32>
    %76 = vector.extract_strided_slice %28 {offsets = [0, 21], sizes = [4, 1], strides = [1, 1]} : vector<4x25xf32> to vector<4x1xf32>
    %77 = vector.broadcast %76 : vector<4x1xf32> to vector<4x256xf32>
    %78 = arith.mulf %75, %77 : vector<4x256xf32>
    %79 = arith.addf %74, %78 : vector<4x256xf32>
    %80 = vector.extract_strided_slice %0 {offsets = [1, 0], sizes = [1, 256], strides = [1, 1]} : vector<5x256xf32> to vector<1x256xf32>
    %81 = vector.broadcast %80 : vector<1x256xf32> to vector<4x256xf32>
    %82 = arith.mulf %79, %81 : vector<4x256xf32>
    %83 = arith.addf %55, %82 : vector<4x256xf32>
    %c0_39 = arith.constant 0 : index
    %c96 = arith.constant 96 : index
    %84 = vector.load %arg11[%c0_39, %c96] : memref<4x512xf32, #tpu.memory_space<vmem>>, vector<4x256xf32>
    %85 = vector.extract_strided_slice %28 {offsets = [0, 2], sizes = [4, 1], strides = [1, 1]} : vector<4x25xf32> to vector<4x1xf32>
    %86 = vector.broadcast %85 : vector<4x1xf32> to vector<4x256xf32>
    %87 = arith.mulf %84, %86 : vector<4x256xf32>
    %c0_40 = arith.constant 0 : index
    %c112 = arith.constant 112 : index
    %88 = vector.load %arg11[%c0_40, %c112] : memref<4x512xf32, #tpu.memory_space<vmem>>, vector<4x256xf32>
    %89 = vector.extract_strided_slice %28 {offsets = [0, 7], sizes = [4, 1], strides = [1, 1]} : vector<4x25xf32> to vector<4x1xf32>
    %90 = vector.broadcast %89 : vector<4x1xf32> to vector<4x256xf32>
    %91 = arith.mulf %88, %90 : vector<4x256xf32>
    %92 = arith.addf %87, %91 : vector<4x256xf32>
    %c0_41 = arith.constant 0 : index
    %c128_42 = arith.constant 128 : index
    %93 = vector.load %arg11[%c0_41, %c128_42] : memref<4x512xf32, #tpu.memory_space<vmem>>, vector<4x256xf32>
    %94 = vector.extract_strided_slice %28 {offsets = [0, 12], sizes = [4, 1], strides = [1, 1]} : vector<4x25xf32> to vector<4x1xf32>
    %95 = vector.broadcast %94 : vector<4x1xf32> to vector<4x256xf32>
    %96 = arith.mulf %93, %95 : vector<4x256xf32>
    %97 = arith.addf %92, %96 : vector<4x256xf32>
    %c0_43 = arith.constant 0 : index
    %c144 = arith.constant 144 : index
    %98 = vector.load %arg11[%c0_43, %c144] : memref<4x512xf32, #tpu.memory_space<vmem>>, vector<4x256xf32>
    %99 = vector.extract_strided_slice %28 {offsets = [0, 17], sizes = [4, 1], strides = [1, 1]} : vector<4x25xf32> to vector<4x1xf32>
    %100 = vector.broadcast %99 : vector<4x1xf32> to vector<4x256xf32>
    %101 = arith.mulf %98, %100 : vector<4x256xf32>
    %102 = arith.addf %97, %101 : vector<4x256xf32>
    %c0_44 = arith.constant 0 : index
    %c160 = arith.constant 160 : index
    %103 = vector.load %arg11[%c0_44, %c160] : memref<4x512xf32, #tpu.memory_space<vmem>>, vector<4x256xf32>
    %104 = vector.extract_strided_slice %28 {offsets = [0, 22], sizes = [4, 1], strides = [1, 1]} : vector<4x25xf32> to vector<4x1xf32>
    %105 = vector.broadcast %104 : vector<4x1xf32> to vector<4x256xf32>
    %106 = arith.mulf %103, %105 : vector<4x256xf32>
    %107 = arith.addf %102, %106 : vector<4x256xf32>
    %108 = arith.addf %83, %107 : vector<4x256xf32>
    %c0_45 = arith.constant 0 : index
    %c97 = arith.constant 97 : index
    %109 = vector.load %arg11[%c0_45, %c97] : memref<4x512xf32, #tpu.memory_space<vmem>>, vector<4x256xf32>
    %110 = vector.extract_strided_slice %28 {offsets = [0, 3], sizes = [4, 1], strides = [1, 1]} : vector<4x25xf32> to vector<4x1xf32>
    %111 = vector.broadcast %110 : vector<4x1xf32> to vector<4x256xf32>
    %112 = arith.mulf %109, %111 : vector<4x256xf32>
    %c0_46 = arith.constant 0 : index
    %c113 = arith.constant 113 : index
    %113 = vector.load %arg11[%c0_46, %c113] : memref<4x512xf32, #tpu.memory_space<vmem>>, vector<4x256xf32>
    %114 = vector.extract_strided_slice %28 {offsets = [0, 8], sizes = [4, 1], strides = [1, 1]} : vector<4x25xf32> to vector<4x1xf32>
    %115 = vector.broadcast %114 : vector<4x1xf32> to vector<4x256xf32>
    %116 = arith.mulf %113, %115 : vector<4x256xf32>
    %117 = arith.addf %112, %116 : vector<4x256xf32>
    %c0_47 = arith.constant 0 : index
    %c129 = arith.constant 129 : index
    %118 = vector.load %arg11[%c0_47, %c129] : memref<4x512xf32, #tpu.memory_space<vmem>>, vector<4x256xf32>
    %119 = vector.extract_strided_slice %28 {offsets = [0, 13], sizes = [4, 1], strides = [1, 1]} : vector<4x25xf32> to vector<4x1xf32>
    %120 = vector.broadcast %119 : vector<4x1xf32> to vector<4x256xf32>
    %121 = arith.mulf %118, %120 : vector<4x256xf32>
    %122 = arith.addf %117, %121 : vector<4x256xf32>
    %c0_48 = arith.constant 0 : index
    %c145 = arith.constant 145 : index
    %123 = vector.load %arg11[%c0_48, %c145] : memref<4x512xf32, #tpu.memory_space<vmem>>, vector<4x256xf32>
    %124 = vector.extract_strided_slice %28 {offsets = [0, 18], sizes = [4, 1], strides = [1, 1]} : vector<4x25xf32> to vector<4x1xf32>
    %125 = vector.broadcast %124 : vector<4x1xf32> to vector<4x256xf32>
    %126 = arith.mulf %123, %125 : vector<4x256xf32>
    %127 = arith.addf %122, %126 : vector<4x256xf32>
    %c0_49 = arith.constant 0 : index
    %c161 = arith.constant 161 : index
    %128 = vector.load %arg11[%c0_49, %c161] : memref<4x512xf32, #tpu.memory_space<vmem>>, vector<4x256xf32>
    %129 = vector.extract_strided_slice %28 {offsets = [0, 23], sizes = [4, 1], strides = [1, 1]} : vector<4x25xf32> to vector<4x1xf32>
    %130 = vector.broadcast %129 : vector<4x1xf32> to vector<4x256xf32>
    %131 = arith.mulf %128, %130 : vector<4x256xf32>
    %132 = arith.addf %127, %131 : vector<4x256xf32>
    %133 = vector.extract_strided_slice %0 {offsets = [3, 0], sizes = [1, 256], strides = [1, 1]} : vector<5x256xf32> to vector<1x256xf32>
    %134 = vector.broadcast %133 : vector<1x256xf32> to vector<4x256xf32>
    %135 = arith.mulf %132, %134 : vector<4x256xf32>
    %136 = arith.addf %108, %135 : vector<4x256xf32>
    %c0_50 = arith.constant 0 : index
    %c98 = arith.constant 98 : index
    %137 = vector.load %arg11[%c0_50, %c98] : memref<4x512xf32, #tpu.memory_space<vmem>>, vector<4x256xf32>
    %138 = vector.extract_strided_slice %28 {offsets = [0, 4], sizes = [4, 1], strides = [1, 1]} : vector<4x25xf32> to vector<4x1xf32>
    %139 = vector.broadcast %138 : vector<4x1xf32> to vector<4x256xf32>
    %140 = arith.mulf %137, %139 : vector<4x256xf32>
    %c0_51 = arith.constant 0 : index
    %c114 = arith.constant 114 : index
    %141 = vector.load %arg11[%c0_51, %c114] : memref<4x512xf32, #tpu.memory_space<vmem>>, vector<4x256xf32>
    %142 = vector.extract_strided_slice %28 {offsets = [0, 9], sizes = [4, 1], strides = [1, 1]} : vector<4x25xf32> to vector<4x1xf32>
    %143 = vector.broadcast %142 : vector<4x1xf32> to vector<4x256xf32>
    %144 = arith.mulf %141, %143 : vector<4x256xf32>
    %145 = arith.addf %140, %144 : vector<4x256xf32>
    %c0_52 = arith.constant 0 : index
    %c130 = arith.constant 130 : index
    %146 = vector.load %arg11[%c0_52, %c130] : memref<4x512xf32, #tpu.memory_space<vmem>>, vector<4x256xf32>
    %147 = vector.extract_strided_slice %28 {offsets = [0, 14], sizes = [4, 1], strides = [1, 1]} : vector<4x25xf32> to vector<4x1xf32>
    %148 = vector.broadcast %147 : vector<4x1xf32> to vector<4x256xf32>
    %149 = arith.mulf %146, %148 : vector<4x256xf32>
    %150 = arith.addf %145, %149 : vector<4x256xf32>
    %c0_53 = arith.constant 0 : index
    %c146 = arith.constant 146 : index
    %151 = vector.load %arg11[%c0_53, %c146] : memref<4x512xf32, #tpu.memory_space<vmem>>, vector<4x256xf32>
    %152 = vector.extract_strided_slice %28 {offsets = [0, 19], sizes = [4, 1], strides = [1, 1]} : vector<4x25xf32> to vector<4x1xf32>
    %153 = vector.broadcast %152 : vector<4x1xf32> to vector<4x256xf32>
    %154 = arith.mulf %151, %153 : vector<4x256xf32>
    %155 = arith.addf %150, %154 : vector<4x256xf32>
    %c0_54 = arith.constant 0 : index
    %c162 = arith.constant 162 : index
    %156 = vector.load %arg11[%c0_54, %c162] : memref<4x512xf32, #tpu.memory_space<vmem>>, vector<4x256xf32>
    %157 = vector.extract_strided_slice %28 {offsets = [0, 24], sizes = [4, 1], strides = [1, 1]} : vector<4x25xf32> to vector<4x1xf32>
    %158 = vector.broadcast %157 : vector<4x1xf32> to vector<4x256xf32>
    %159 = arith.mulf %156, %158 : vector<4x256xf32>
    %160 = arith.addf %155, %159 : vector<4x256xf32>
    %161 = vector.extract_strided_slice %0 {offsets = [4, 0], sizes = [1, 256], strides = [1, 1]} : vector<5x256xf32> to vector<1x256xf32>
    %162 = vector.broadcast %161 : vector<1x256xf32> to vector<4x256xf32>
    %163 = arith.mulf %160, %162 : vector<4x256xf32>
    %164 = arith.addf %136, %163 : vector<4x256xf32>
    %165 = vector.extract_strided_slice %11 {offsets = [0, 1], sizes = [4, 1], strides = [1, 1]} : vector<4x2xf32> to vector<4x1xf32>
    %166 = vector.broadcast %165 : vector<4x1xf32> to vector<4x256xf32>
    %167 = arith.addf %164, %166 : vector<4x256xf32>
    %cst_55 = arith.constant 0.000000e+00 : f32
    %168 = vector.broadcast %cst_55 : f32 to vector<4x256xf32>
    %169 = arith.subf %168, %167 : vector<4x256xf32>
    %170 = math.exp %169 : vector<4x256xf32>
    %cst_56 = arith.constant 1.000000e+00 : f32
    %171 = vector.broadcast %cst_56 : f32 to vector<4x256xf32>
    %172 = arith.addf %171, %170 : vector<4x256xf32>
    %173 = tpu.reciprocal %172 {approx = true} : vector<4x256xf32> -> vector<4x256xf32>
    %174 = arith.mulf %167, %173 : vector<4x256xf32>
    %c0_57 = arith.constant 0 : index
    %c0_58 = arith.constant 0 : index
    %175 = vector.load %arg6[%c0_57, %c0_58] : memref<8x4xf32, #tpu.memory_space<vmem>>, vector<8x4xf32>
    %cst_59 = arith.constant dense<0.000000e+00> : vector<8x256xf32>
    %176 = tpu.matmul %175, %174, %cst_59 {dimension_numbers = #tpu.dot_dimension_numbers<[1], [0], [0], [1], [0, 0, 1, 1], [], []>} : vector<8x4xf32>, vector<4x256xf32>, vector<8x256xf32> -> vector<8x256xf32>
    %177 = arith.addf %27, %176 : vector<8x256xf32>
    %178 = vector.extract_strided_slice %12 {offsets = [0, 0], sizes = [8, 1], strides = [1, 1]} : vector<8x2xf32> to vector<8x1xf32>
    %179 = vector.broadcast %178 : vector<8x1xf32> to vector<8x256xf32>
    %180 = arith.addf %177, %179 : vector<8x256xf32>
    %c0_60 = arith.constant 0 : index
    %c128_61 = arith.constant 128 : index
    %181 = vector.load %arg12[%c0_60, %c128_61] : memref<8x512xf32, #tpu.memory_space<vmem>>, vector<8x256xf32>
    tpu.vector_store %arg12[%c0_60, %c128_61], %180 {strides = array<i32>} : memref<8x512xf32, #tpu.memory_space<vmem>>, vector<8x256xf32>,
    %182 = vector.extract_strided_slice %10 {offsets = [0, 0], sizes = [8, 256], strides = [1, 1]} : vector<16x256xf32> to vector<8x256xf32>
    %183 = arith.addf %180, %182 : vector<8x256xf32>
    %c0_62 = arith.constant 0 : index
    %c0_63 = arith.constant 0 : index
    %c0_64 = arith.constant 0 : index
    %184 = vector.load %arg10[%c0_62, %c0_63, %c0_64] : memref<1x16x256xf32, #tpu.memory_space<vmem>>, vector<1x8x256xf32>
    %185 = vector.shape_cast %184 : vector<1x8x256xf32> to vector<8x256xf32>
    %186 = vector.shape_cast %183 : vector<8x256xf32> to vector<1x8x256xf32>
    tpu.vector_store %arg10[%c0_62, %c0_63, %c0_64], %186 {strides = array<i32>} : memref<1x16x256xf32, #tpu.memory_space<vmem>>, vector<1x8x256xf32>,
    %c0_65 = arith.constant 0 : index
    %c0_66 = arith.constant 0 : index
    %187 = vector.load %arg8[%c0_65, %c0_66] : memref<8x25xf32, #tpu.memory_space<vmem>>, vector<8x25xf32>
    %c0_67 = arith.constant 0 : index
    %c94_68 = arith.constant 94 : index
    %188 = vector.load %arg12[%c0_67, %c94_68] : memref<8x512xf32, #tpu.memory_space<vmem>>, vector<8x256xf32>
    %189 = vector.extract_strided_slice %187 {offsets = [0, 0], sizes = [8, 1], strides = [1, 1]} : vector<8x25xf32> to vector<8x1xf32>
    %190 = vector.broadcast %189 : vector<8x1xf32> to vector<8x256xf32>
    %191 = arith.mulf %188, %190 : vector<8x256xf32>
    %c0_69 = arith.constant 0 : index
    %c110_70 = arith.constant 110 : index
    %192 = vector.load %arg12[%c0_69, %c110_70] : memref<8x512xf32, #tpu.memory_space<vmem>>, vector<8x256xf32>
    %193 = vector.extract_strided_slice %187 {offsets = [0, 5], sizes = [8, 1], strides = [1, 1]} : vector<8x25xf32> to vector<8x1xf32>
    %194 = vector.broadcast %193 : vector<8x1xf32> to vector<8x256xf32>
    %195 = arith.mulf %192, %194 : vector<8x256xf32>
    %196 = arith.addf %191, %195 : vector<8x256xf32>
    %c0_71 = arith.constant 0 : index
    %c126_72 = arith.constant 126 : index
    %197 = vector.load %arg12[%c0_71, %c126_72] : memref<8x512xf32, #tpu.memory_space<vmem>>, vector<8x256xf32>
    %198 = vector.extract_strided_slice %187 {offsets = [0, 10], sizes = [8, 1], strides = [1, 1]} : vector<8x25xf32> to vector<8x1xf32>
    %199 = vector.broadcast %198 : vector<8x1xf32> to vector<8x256xf32>
    %200 = arith.mulf %197, %199 : vector<8x256xf32>
    %201 = arith.addf %196, %200 : vector<8x256xf32>
    %c0_73 = arith.constant 0 : index
    %c142_74 = arith.constant 142 : index
    %202 = vector.load %arg12[%c0_73, %c142_74] : memref<8x512xf32, #tpu.memory_space<vmem>>, vector<8x256xf32>
    %203 = vector.extract_strided_slice %187 {offsets = [0, 15], sizes = [8, 1], strides = [1, 1]} : vector<8x25xf32> to vector<8x1xf32>
    %204 = vector.broadcast %203 : vector<8x1xf32> to vector<8x256xf32>
    %205 = arith.mulf %202, %204 : vector<8x256xf32>
    %206 = arith.addf %201, %205 : vector<8x256xf32>
    %c0_75 = arith.constant 0 : index
    %c158_76 = arith.constant 158 : index
    %207 = vector.load %arg12[%c0_75, %c158_76] : memref<8x512xf32, #tpu.memory_space<vmem>>, vector<8x256xf32>
    %208 = vector.extract_strided_slice %187 {offsets = [0, 20], sizes = [8, 1], strides = [1, 1]} : vector<8x25xf32> to vector<8x1xf32>
    %209 = vector.broadcast %208 : vector<8x1xf32> to vector<8x256xf32>
    %210 = arith.mulf %207, %209 : vector<8x256xf32>
    %211 = arith.addf %206, %210 : vector<8x256xf32>
    %212 = vector.extract_strided_slice %0 {offsets = [0, 0], sizes = [1, 256], strides = [1, 1]} : vector<5x256xf32> to vector<1x256xf32>
    %213 = vector.broadcast %212 : vector<1x256xf32> to vector<8x256xf32>
    %214 = arith.mulf %211, %213 : vector<8x256xf32>
    %c0_77 = arith.constant 0 : index
    %c95_78 = arith.constant 95 : index
    %215 = vector.load %arg12[%c0_77, %c95_78] : memref<8x512xf32, #tpu.memory_space<vmem>>, vector<8x256xf32>
    %216 = vector.extract_strided_slice %187 {offsets = [0, 1], sizes = [8, 1], strides = [1, 1]} : vector<8x25xf32> to vector<8x1xf32>
    %217 = vector.broadcast %216 : vector<8x1xf32> to vector<8x256xf32>
    %218 = arith.mulf %215, %217 : vector<8x256xf32>
    %c0_79 = arith.constant 0 : index
    %c111_80 = arith.constant 111 : index
    %219 = vector.load %arg12[%c0_79, %c111_80] : memref<8x512xf32, #tpu.memory_space<vmem>>, vector<8x256xf32>
    %220 = vector.extract_strided_slice %187 {offsets = [0, 6], sizes = [8, 1], strides = [1, 1]} : vector<8x25xf32> to vector<8x1xf32>
    %221 = vector.broadcast %220 : vector<8x1xf32> to vector<8x256xf32>
    %222 = arith.mulf %219, %221 : vector<8x256xf32>
    %223 = arith.addf %218, %222 : vector<8x256xf32>
    %c0_81 = arith.constant 0 : index
    %c127_82 = arith.constant 127 : index
    %224 = vector.load %arg12[%c0_81, %c127_82] : memref<8x512xf32, #tpu.memory_space<vmem>>, vector<8x256xf32>
    %225 = vector.extract_strided_slice %187 {offsets = [0, 11], sizes = [8, 1], strides = [1, 1]} : vector<8x25xf32> to vector<8x1xf32>
    %226 = vector.broadcast %225 : vector<8x1xf32> to vector<8x256xf32>
    %227 = arith.mulf %224, %226 : vector<8x256xf32>
    %228 = arith.addf %223, %227 : vector<8x256xf32>
    %c0_83 = arith.constant 0 : index
    %c143_84 = arith.constant 143 : index
    %229 = vector.load %arg12[%c0_83, %c143_84] : memref<8x512xf32, #tpu.memory_space<vmem>>, vector<8x256xf32>
    %230 = vector.extract_strided_slice %187 {offsets = [0, 16], sizes = [8, 1], strides = [1, 1]} : vector<8x25xf32> to vector<8x1xf32>
    %231 = vector.broadcast %230 : vector<8x1xf32> to vector<8x256xf32>
    %232 = arith.mulf %229, %231 : vector<8x256xf32>
    %233 = arith.addf %228, %232 : vector<8x256xf32>
    %c0_85 = arith.constant 0 : index
    %c159_86 = arith.constant 159 : index
    %234 = vector.load %arg12[%c0_85, %c159_86] : memref<8x512xf32, #tpu.memory_space<vmem>>, vector<8x256xf32>
    %235 = vector.extract_strided_slice %187 {offsets = [0, 21], sizes = [8, 1], strides = [1, 1]} : vector<8x25xf32> to vector<8x1xf32>
    %236 = vector.broadcast %235 : vector<8x1xf32> to vector<8x256xf32>
    %237 = arith.mulf %234, %236 : vector<8x256xf32>
    %238 = arith.addf %233, %237 : vector<8x256xf32>
    %239 = vector.extract_strided_slice %0 {offsets = [1, 0], sizes = [1, 256], strides = [1, 1]} : vector<5x256xf32> to vector<1x256xf32>
    %240 = vector.broadcast %239 : vector<1x256xf32> to vector<8x256xf32>
    %241 = arith.mulf %238, %240 : vector<8x256xf32>
    %242 = arith.addf %214, %241 : vector<8x256xf32>
    %c0_87 = arith.constant 0 : index
    %c96_88 = arith.constant 96 : index
    %243 = vector.load %arg12[%c0_87, %c96_88] : memref<8x512xf32, #tpu.memory_space<vmem>>, vector<8x256xf32>
    %244 = vector.extract_strided_slice %187 {offsets = [0, 2], sizes = [8, 1], strides = [1, 1]} : vector<8x25xf32> to vector<8x1xf32>
    %245 = vector.broadcast %244 : vector<8x1xf32> to vector<8x256xf32>
    %246 = arith.mulf %243, %245 : vector<8x256xf32>
    %c0_89 = arith.constant 0 : index
    %c112_90 = arith.constant 112 : index
    %247 = vector.load %arg12[%c0_89, %c112_90] : memref<8x512xf32, #tpu.memory_space<vmem>>, vector<8x256xf32>
    %248 = vector.extract_strided_slice %187 {offsets = [0, 7], sizes = [8, 1], strides = [1, 1]} : vector<8x25xf32> to vector<8x1xf32>
    %249 = vector.broadcast %248 : vector<8x1xf32> to vector<8x256xf32>
    %250 = arith.mulf %247, %249 : vector<8x256xf32>
    %251 = arith.addf %246, %250 : vector<8x256xf32>
    %c0_91 = arith.constant 0 : index
    %c128_92 = arith.constant 128 : index
    %252 = vector.load %arg12[%c0_91, %c128_92] : memref<8x512xf32, #tpu.memory_space<vmem>>, vector<8x256xf32>
    %253 = vector.extract_strided_slice %187 {offsets = [0, 12], sizes = [8, 1], strides = [1, 1]} : vector<8x25xf32> to vector<8x1xf32>
    %254 = vector.broadcast %253 : vector<8x1xf32> to vector<8x256xf32>
    %255 = arith.mulf %252, %254 : vector<8x256xf32>
    %256 = arith.addf %251, %255 : vector<8x256xf32>
    %c0_93 = arith.constant 0 : index
    %c144_94 = arith.constant 144 : index
    %257 = vector.load %arg12[%c0_93, %c144_94] : memref<8x512xf32, #tpu.memory_space<vmem>>, vector<8x256xf32>
    %258 = vector.extract_strided_slice %187 {offsets = [0, 17], sizes = [8, 1], strides = [1, 1]} : vector<8x25xf32> to vector<8x1xf32>
    %259 = vector.broadcast %258 : vector<8x1xf32> to vector<8x256xf32>
    %260 = arith.mulf %257, %259 : vector<8x256xf32>
    %261 = arith.addf %256, %260 : vector<8x256xf32>
    %c0_95 = arith.constant 0 : index
    %c160_96 = arith.constant 160 : index
    %262 = vector.load %arg12[%c0_95, %c160_96] : memref<8x512xf32, #tpu.memory_space<vmem>>, vector<8x256xf32>
    %263 = vector.extract_strided_slice %187 {offsets = [0, 22], sizes = [8, 1], strides = [1, 1]} : vector<8x25xf32> to vector<8x1xf32>
    %264 = vector.broadcast %263 : vector<8x1xf32> to vector<8x256xf32>
    %265 = arith.mulf %262, %264 : vector<8x256xf32>
    %266 = arith.addf %261, %265 : vector<8x256xf32>
    %267 = arith.addf %242, %266 : vector<8x256xf32>
    %c0_97 = arith.constant 0 : index
    %c97_98 = arith.constant 97 : index
    %268 = vector.load %arg12[%c0_97, %c97_98] : memref<8x512xf32, #tpu.memory_space<vmem>>, vector<8x256xf32>
    %269 = vector.extract_strided_slice %187 {offsets = [0, 3], sizes = [8, 1], strides = [1, 1]} : vector<8x25xf32> to vector<8x1xf32>
    %270 = vector.broadcast %269 : vector<8x1xf32> to vector<8x256xf32>
    %271 = arith.mulf %268, %270 : vector<8x256xf32>
    %c0_99 = arith.constant 0 : index
    %c113_100 = arith.constant 113 : index
    %272 = vector.load %arg12[%c0_99, %c113_100] : memref<8x512xf32, #tpu.memory_space<vmem>>, vector<8x256xf32>
    %273 = vector.extract_strided_slice %187 {offsets = [0, 8], sizes = [8, 1], strides = [1, 1]} : vector<8x25xf32> to vector<8x1xf32>
    %274 = vector.broadcast %273 : vector<8x1xf32> to vector<8x256xf32>
    %275 = arith.mulf %272, %274 : vector<8x256xf32>
    %276 = arith.addf %271, %275 : vector<8x256xf32>
    %c0_101 = arith.constant 0 : index
    %c129_102 = arith.constant 129 : index
    %277 = vector.load %arg12[%c0_101, %c129_102] : memref<8x512xf32, #tpu.memory_space<vmem>>, vector<8x256xf32>
    %278 = vector.extract_strided_slice %187 {offsets = [0, 13], sizes = [8, 1], strides = [1, 1]} : vector<8x25xf32> to vector<8x1xf32>
    %279 = vector.broadcast %278 : vector<8x1xf32> to vector<8x256xf32>
    %280 = arith.mulf %277, %279 : vector<8x256xf32>
    %281 = arith.addf %276, %280 : vector<8x256xf32>
    %c0_103 = arith.constant 0 : index
    %c145_104 = arith.constant 145 : index
    %282 = vector.load %arg12[%c0_103, %c145_104] : memref<8x512xf32, #tpu.memory_space<vmem>>, vector<8x256xf32>
    %283 = vector.extract_strided_slice %187 {offsets = [0, 18], sizes = [8, 1], strides = [1, 1]} : vector<8x25xf32> to vector<8x1xf32>
    %284 = vector.broadcast %283 : vector<8x1xf32> to vector<8x256xf32>
    %285 = arith.mulf %282, %284 : vector<8x256xf32>
    %286 = arith.addf %281, %285 : vector<8x256xf32>
    %c0_105 = arith.constant 0 : index
    %c161_106 = arith.constant 161 : index
    %287 = vector.load %arg12[%c0_105, %c161_106] : memref<8x512xf32, #tpu.memory_space<vmem>>, vector<8x256xf32>
    %288 = vector.extract_strided_slice %187 {offsets = [0, 23], sizes = [8, 1], strides = [1, 1]} : vector<8x25xf32> to vector<8x1xf32>
    %289 = vector.broadcast %288 : vector<8x1xf32> to vector<8x256xf32>
    %290 = arith.mulf %287, %289 : vector<8x256xf32>
    %291 = arith.addf %286, %290 : vector<8x256xf32>
    %292 = vector.extract_strided_slice %0 {offsets = [3, 0], sizes = [1, 256], strides = [1, 1]} : vector<5x256xf32> to vector<1x256xf32>
    %293 = vector.broadcast %292 : vector<1x256xf32> to vector<8x256xf32>
    %294 = arith.mulf %291, %293 : vector<8x256xf32>
    %295 = arith.addf %267, %294 : vector<8x256xf32>
    %c0_107 = arith.constant 0 : index
    %c98_108 = arith.constant 98 : index
    %296 = vector.load %arg12[%c0_107, %c98_108] : memref<8x512xf32, #tpu.memory_space<vmem>>, vector<8x256xf32>
    %297 = vector.extract_strided_slice %187 {offsets = [0, 4], sizes = [8, 1], strides = [1, 1]} : vector<8x25xf32> to vector<8x1xf32>
    %298 = vector.broadcast %297 : vector<8x1xf32> to vector<8x256xf32>
    %299 = arith.mulf %296, %298 : vector<8x256xf32>
    %c0_109 = arith.constant 0 : index
    %c114_110 = arith.constant 114 : index
    %300 = vector.load %arg12[%c0_109, %c114_110] : memref<8x512xf32, #tpu.memory_space<vmem>>, vector<8x256xf32>
    %301 = vector.extract_strided_slice %187 {offsets = [0, 9], sizes = [8, 1], strides = [1, 1]} : vector<8x25xf32> to vector<8x1xf32>
    %302 = vector.broadcast %301 : vector<8x1xf32> to vector<8x256xf32>
    %303 = arith.mulf %300, %302 : vector<8x256xf32>
    %304 = arith.addf %299, %303 : vector<8x256xf32>
    %c0_111 = arith.constant 0 : index
    %c130_112 = arith.constant 130 : index
    %305 = vector.load %arg12[%c0_111, %c130_112] : memref<8x512xf32, #tpu.memory_space<vmem>>, vector<8x256xf32>
    %306 = vector.extract_strided_slice %187 {offsets = [0, 14], sizes = [8, 1], strides = [1, 1]} : vector<8x25xf32> to vector<8x1xf32>
    %307 = vector.broadcast %306 : vector<8x1xf32> to vector<8x256xf32>
    %308 = arith.mulf %305, %307 : vector<8x256xf32>
    %309 = arith.addf %304, %308 : vector<8x256xf32>
    %c0_113 = arith.constant 0 : index
    %c146_114 = arith.constant 146 : index
    %310 = vector.load %arg12[%c0_113, %c146_114] : memref<8x512xf32, #tpu.memory_space<vmem>>, vector<8x256xf32>
    %311 = vector.extract_strided_slice %187 {offsets = [0, 19], sizes = [8, 1], strides = [1, 1]} : vector<8x25xf32> to vector<8x1xf32>
    %312 = vector.broadcast %311 : vector<8x1xf32> to vector<8x256xf32>
    %313 = arith.mulf %310, %312 : vector<8x256xf32>
    %314 = arith.addf %309, %313 : vector<8x256xf32>
    %c0_115 = arith.constant 0 : index
    %c162_116 = arith.constant 162 : index
    %315 = vector.load %arg12[%c0_115, %c162_116] : memref<8x512xf32, #tpu.memory_space<vmem>>, vector<8x256xf32>
    %316 = vector.extract_strided_slice %187 {offsets = [0, 24], sizes = [8, 1], strides = [1, 1]} : vector<8x25xf32> to vector<8x1xf32>
    %317 = vector.broadcast %316 : vector<8x1xf32> to vector<8x256xf32>
    %318 = arith.mulf %315, %317 : vector<8x256xf32>
    %319 = arith.addf %314, %318 : vector<8x256xf32>
    %320 = vector.extract_strided_slice %0 {offsets = [4, 0], sizes = [1, 256], strides = [1, 1]} : vector<5x256xf32> to vector<1x256xf32>
    %321 = vector.broadcast %320 : vector<1x256xf32> to vector<8x256xf32>
    %322 = arith.mulf %319, %321 : vector<8x256xf32>
    %323 = arith.addf %295, %322 : vector<8x256xf32>
    %324 = vector.extract_strided_slice %12 {offsets = [0, 1], sizes = [8, 1], strides = [1, 1]} : vector<8x2xf32> to vector<8x1xf32>
    %325 = vector.broadcast %324 : vector<8x1xf32> to vector<8x256xf32>
    %326 = arith.addf %323, %325 : vector<8x256xf32>
    %327 = vector.extract_strided_slice %10 {offsets = [8, 0], sizes = [8, 256], strides = [1, 1]} : vector<16x256xf32> to vector<8x256xf32>
    %328 = arith.addf %326, %327 : vector<8x256xf32>
    %c0_117 = arith.constant 0 : index
    %c8 = arith.constant 8 : index
    %c0_118 = arith.constant 0 : index
    %329 = vector.load %arg10[%c0_117, %c8, %c0_118] : memref<1x16x256xf32, #tpu.memory_space<vmem>>, vector<1x8x256xf32>
    %330 = vector.shape_cast %329 : vector<1x8x256xf32> to vector<8x256xf32>
    %331 = vector.shape_cast %328 : vector<8x256xf32> to vector<1x8x256xf32>
    tpu.vector_store %arg10[%c0_117, %c8, %c0_118], %331 {strides = array<i32>} : memref<1x16x256xf32, #tpu.memory_space<vmem>>, vector<1x8x256xf32>,
    return
  }
  func.func @transform_0(%arg0: i32) -> (i32, i32, i32) {
    %c0_i32 = arith.constant 0 : i32
    %c0_i32_0 = arith.constant 0 : i32
    %c0_i32_1 = arith.constant 0 : i32
    return %arg0, %c0_i32, %c0_i32_0 : i32, i32, i32
  }
  func.func @transform_1(%arg0: i32) -> (i32, i32) {
    %c0_i32 = arith.constant 0 : i32
    %c0_i32_0 = arith.constant 0 : i32
    %c0_i32_1 = arith.constant 0 : i32
    return %c0_i32, %c0_i32_0 : i32, i32
  }
  func.func @transform_2(%arg0: i32) -> (i32, i32) {
    %c0_i32 = arith.constant 0 : i32
    %c0_i32_0 = arith.constant 0 : i32
    %c0_i32_1 = arith.constant 0 : i32
    return %c0_i32, %c0_i32_0 : i32, i32
  }
  func.func @transform_3(%arg0: i32) -> (i32, i32) {
    %c0_i32 = arith.constant 0 : i32
    %c0_i32_0 = arith.constant 0 : i32
    %c0_i32_1 = arith.constant 0 : i32
    return %c0_i32, %c0_i32_0 : i32, i32
  }
  func.func @transform_4(%arg0: i32) -> (i32, i32) {
    %c0_i32 = arith.constant 0 : i32
    %c0_i32_0 = arith.constant 0 : i32
    %c0_i32_1 = arith.constant 0 : i32
    return %c0_i32, %c0_i32_0 : i32, i32
  }
  func.func @transform_5(%arg0: i32) -> (i32, i32) {
    %c0_i32 = arith.constant 0 : i32
    %c0_i32_0 = arith.constant 0 : i32
    %c0_i32_1 = arith.constant 0 : i32
    return %c0_i32, %c0_i32_0 : i32, i32
  }
  func.func @transform_6(%arg0: i32) -> (i32, i32) {
    %c0_i32 = arith.constant 0 : i32
    %c0_i32_0 = arith.constant 0 : i32
    %c0_i32_1 = arith.constant 0 : i32
    return %c0_i32, %c0_i32_0 : i32, i32
  }
  func.func @transform_7(%arg0: i32) -> (i32, i32) {
    %c0_i32 = arith.constant 0 : i32
    %c0_i32_0 = arith.constant 0 : i32
    %c0_i32_1 = arith.constant 0 : i32
    return %c0_i32, %c0_i32_0 : i32, i32
  }
  func.func @transform_8(%arg0: i32) -> (i32, i32) {
    %c0_i32 = arith.constant 0 : i32
    %c0_i32_0 = arith.constant 0 : i32
    %c0_i32_1 = arith.constant 0 : i32
    return %c0_i32, %c0_i32_0 : i32, i32
  }
  func.func @transform_9(%arg0: i32) -> (i32, i32, i32) {
    %c0_i32 = arith.constant 0 : i32
    %c0_i32_0 = arith.constant 0 : i32
    %c0_i32_1 = arith.constant 0 : i32
    return %arg0, %c0_i32, %c0_i32_0 : i32, i32, i32
  }
}

</mosaic_0001>

<llo_original>
// kernel: tpu_custom_call.1
$region0: #{tpu_custom_call.1}
  #allocation0 [shape = 'u32[]', space=smem, size = 0x4, offset = 0x4, fixed_abs, tag = 'smem constant byte address 0x4 - core index']
  #allocation1 [shape = 'u32[144,128]{1,0:T(1,128)}', space=vmem, size = 0x12000, scoped, tag = 'internal scratch']
  #allocation2 [shape = 'f32[4,512]{1,0:T(4,128)}', space=vmem, size = 0x2000, scoped, tag = 'scratch operand']
  #allocation3 [shape = 'f32[8,512]{1,0:T(8,128)}', space=vmem, size = 0x4000, scoped, tag = 'scratch operand']
  %s0 = inlined_call_operand.hbm [shape: f32[2,16,256], index: 0, kind: input, shape index: {}]
  %s1 = inlined_call_operand.vmem [shape: f32[4,16], index: 1, kind: input, shape index: {}]
  %s2 = inlined_call_operand.vmem [shape: f32[4,2], index: 2, kind: input, shape index: {}]
  %s3 = inlined_call_operand.vmem [shape: f32[4,25], index: 3, kind: input, shape index: {}]
  %s4 = inlined_call_operand.vmem [shape: f32[8,4], index: 4, kind: input, shape index: {}]
  %s5 = inlined_call_operand.vmem [shape: f32[8,4], index: 5, kind: input, shape index: {}]
  %s6 = inlined_call_operand.vmem [shape: f32[8,2], index: 6, kind: input, shape index: {}]
  %s7 = inlined_call_operand.vmem [shape: f32[8,25], index: 7, kind: input, shape index: {}]
  %s8 = inlined_call_operand.vmem [shape: f32[5,256], index: 8, kind: input, shape index: {}]
  %s9 = inlined_call_operand.hbm [shape: f32[2,16,256], index: 9, kind: output, shape index: {}]
  %s10 = sld [smem:[#allocation0]]
  $region73: #{tpu_custom_call.1} parent=0
    _
  %s12 = ssub.s32 1, %s10
  %s13 = scalar_select 0, %s12, %s10
  $region1: #{tpu_custom_call.1} parent=0
    #allocation4 [shape = 'u8[32768]{0}', space=vmem, size = 0x8000, scoped, tag = 'input window, operand 0']
    #allocation5 [shape = 's32[2]{0}', space=sflag, size = 0x8, scoped, tag = 'scoped memory for tpu_custom_call.1']
    #allocation6 [shape = 's32[2]{0}', space=sflag, size = 0x8, scoped, tag = 'scoped memory for tpu_custom_call.1']
    #allocation7 [shape = 'u8[32768]{0}', space=vmem, size = 0x8000, scoped, tag = 'output window, operand 0']
    %14 = vsyncpa [#allocation5], 0
    %s15 = scalar_lea.sflag [#allocation5], 1
    %16 = vsyncpa %s15, 0
    %17 = vsyncpa [#allocation6], 0
    %s18 = scalar_lea.sflag [#allocation6], 1
    %19 = vsyncpa %s18, 0
    loop: start=0, step=1, limit=4
    $region2: #{tpu_custom_call.1} parent=1 // loop_pre_header
      _
    $region3: #{tpu_custom_call.1} parent=1 // loop_header
      %s21 = sphi 0, %s25
      %p22 = scmp.ge.s32.totalorder %s21, 4
      %s31 = sphi 0, %s33
      %s34 = sphi 0, %s31
      %s35 = sphi 0, %s34
      %s51 = sphi 0, %s35
      %s55 = sphi 0, %s55
      %s57 = sphi 0, %s55
      %s58 = sphi 0, %s57
      %s72 = sphi 0, %s58
      %s76 = sphi 0, %s76
      %s78 = sphi 0, %s76
      %s79 = sphi 0, %s78
      %s93 = sphi 0, %s79
      %s97 = sphi 0, %s97
      %s99 = sphi 0, %s97
      %s100 = sphi 0, %s99
      %s114 = sphi 0, %s100
      %s118 = sphi 0, %s118
      %s120 = sphi 0, %s118
      %s121 = sphi 0, %s120
      %s135 = sphi 0, %s121
      %s139 = sphi 0, %s139
      %s141 = sphi 0, %s139
      %s142 = sphi 0, %s141
      %s156 = sphi 0, %s142
      %s160 = sphi 0, %s160
      %s162 = sphi 0, %s160
      %s163 = sphi 0, %s162
      %s177 = sphi 0, %s163
      %s181 = sphi 0, %s181
      %s183 = sphi 0, %s181
      %s184 = sphi 0, %s183
      %s198 = sphi 0, %s184
      %s202 = sphi 0, %s202
      %s204 = sphi 0, %s202
      %s205 = sphi 0, %s204
      %s219 = sphi 0, %s205
      %s225 = sphi 0, %s227
      %s228 = sphi 0, %s225
      %s229 = sphi 0, %s228
      %s245 = sphi 0, %s229
    $region4: #{tpu_custom_call.1} parent=1 // loop_header_branch
      %24 = sbr.rel (%p22) target = $region8
    $region5: #{tpu_custom_call.1} parent=1 // loop_body
      %s26 = ssub.s32 %s21, 1
      %s27 = ssub.s32 %s21, 2
      %s28 = sadd.s32 %s21, 1
      %s29 = ssub.s32 %s21, %s28
      %p30 = scmp.eq.s32.totalorder %s29, 0
      %s32 = sadd.s32 %s31, 1
      %s33 = scalar_select %p30, %s31, %s32
      %p36 = pneg %p30
      %p37 = scmp.eq.s32.totalorder %s21, 1
      %p38 = por %p36, %p37
      %p39 = scmp.ne.s32.totalorder %s31, %s34
      %p40 = scmp.eq.s32.totalorder %s21, 0
      %p41 = por %p39, %p40
      %p42 = scmp.ne.s32.totalorder %s31, %s34
      %p43 = scmp.eq.s32.totalorder %s26, 1
      %p44 = por %p42, %p43
      %p45 = scmp.ne.s32.totalorder %s34, %s35
      %p46 = scmp.eq.s32.totalorder %s26, 0
      %p47 = por %p45, %p46
      %p48 = scmp.ne.s32.totalorder %s34, %s35
      %p49 = scmp.eq.s32.totalorder %s27, 1
      %p50 = por %p48, %p49
      %p52 = scmp.ne.s32.totalorder %s35, %s51
      %p53 = scmp.eq.s32.totalorder %s27, 0
      %p54 = por %p52, %p53
      %s56 = sadd.s32 %s55, 1
      %p59 = scmp.eq.s32.totalorder %s21, 1
      %p60 = scmp.ne.s32.totalorder %s55, %s57
      %p61 = scmp.eq.s32.totalorder %s21, 0
      %p62 = por %p60, %p61
      %p63 = scmp.ne.s32.totalorder %s55, %s57
      %p64 = scmp.eq.s32.totalorder %s26, 1
      %p65 = por %p63, %p64
      %p66 = scmp.ne.s32.totalorder %s57, %s58
      %p67 = scmp.eq.s32.totalorder %s26, 0
      %p68 = por %p66, %p67
      %p69 = scmp.ne.s32.totalorder %s57, %s58
      %p70 = scmp.eq.s32.totalorder %s27, 1
      %p71 = por %p69, %p70
      %p73 = scmp.ne.s32.totalorder %s58, %s72
      %p74 = scmp.eq.s32.totalorder %s27, 0
      %p75 = por %p73, %p74
      %s77 = sadd.s32 %s76, 1
      %p80 = scmp.eq.s32.totalorder %s21, 1
      %p81 = scmp.ne.s32.totalorder %s76, %s78
      %p82 = scmp.eq.s32.totalorder %s21, 0
      %p83 = por %p81, %p82
      %p84 = scmp.ne.s32.totalorder %s76, %s78
      %p85 = scmp.eq.s32.totalorder %s26, 1
      %p86 = por %p84, %p85
      %p87 = scmp.ne.s32.totalorder %s78, %s79
      %p88 = scmp.eq.s32.totalorder %s26, 0
      %p89 = por %p87, %p88
      %p90 = scmp.ne.s32.totalorder %s78, %s79
      %p91 = scmp.eq.s32.totalorder %s27, 1
      %p92 = por %p90, %p91
      %p94 = scmp.ne.s32.totalorder %s79, %s93
      %p95 = scmp.eq.s32.totalorder %s27, 0
      %p96 = por %p94, %p95
      %s98 = sadd.s32 %s97, 1
      %p101 = scmp.eq.s32.totalorder %s21, 1
      %p102 = scmp.ne.s32.totalorder %s97, %s99
      %p103 = scmp.eq.s32.totalorder %s21, 0
      %p104 = por %p102, %p103
      %p105 = scmp.ne.s32.totalorder %s97, %s99
      %p106 = scmp.eq.s32.totalorder %s26, 1
      %p107 = por %p105, %p106
      %p108 = scmp.ne.s32.totalorder %s99, %s100
      %p109 = scmp.eq.s32.totalorder %s26, 0
      %p110 = por %p108, %p109
      %p111 = scmp.ne.s32.totalorder %s99, %s100
      %p112 = scmp.eq.s32.totalorder %s27, 1
      %p113 = por %p111, %p112
      %p115 = scmp.ne.s32.totalorder %s100, %s114
      %p116 = scmp.eq.s32.totalorder %s27, 0
      %p117 = por %p115, %p116
      %s119 = sadd.s32 %s118, 1
      %p122 = scmp.eq.s32.totalorder %s21, 1
      %p123 = scmp.ne.s32.totalorder %s118, %s120
      %p124 = scmp.eq.s32.totalorder %s21, 0
      %p125 = por %p123, %p124
      %p126 = scmp.ne.s32.totalorder %s118, %s120
      %p127 = scmp.eq.s32.totalorder %s26, 1
      %p128 = por %p126, %p127
      %p129 = scmp.ne.s32.totalorder %s120, %s121
      %p130 = scmp.eq.s32.totalorder %s26, 0
      %p131 = por %p129, %p130
      %p132 = scmp.ne.s32.totalorder %s120, %s121
      %p133 = scmp.eq.s32.totalorder %s27, 1
      %p134 = por %p132, %p133
      %p136 = scmp.ne.s32.totalorder %s121, %s135
      %p137 = scmp.eq.s32.totalorder %s27, 0
      %p138 = por %p136, %p137
      %s140 = sadd.s32 %s139, 1
      %p143 = scmp.eq.s32.totalorder %s21, 1
      %p144 = scmp.ne.s32.totalorder %s139, %s141
      %p145 = scmp.eq.s32.totalorder %s21, 0
      %p146 = por %p144, %p145
      %p147 = scmp.ne.s32.totalorder %s139, %s141
      %p148 = scmp.eq.s32.totalorder %s26, 1
      %p149 = por %p147, %p148
      %p150 = scmp.ne.s32.totalorder %s141, %s142
      %p151 = scmp.eq.s32.totalorder %s26, 0
      %p152 = por %p150, %p151
      %p153 = scmp.ne.s32.totalorder %s141, %s142
      %p154 = scmp.eq.s32.totalorder %s27, 1
      %p155 = por %p153, %p154
      %p157 = scmp.ne.s32.totalorder %s142, %s156
      %p158 = scmp.eq.s32.totalorder %s27, 0
      %p159 = por %p157, %p158
      %s161 = sadd.s32 %s160, 1
      %p164 = scmp.eq.s32.totalorder %s21, 1
      %p165 = scmp.ne.s32.totalorder %s160, %s162
      %p166 = scmp.eq.s32.totalorder %s21, 0
      %p167 = por %p165, %p166
      %p168 = scmp.ne.s32.totalorder %s160, %s162
      %p169 = scmp.eq.s32.totalorder %s26, 1
      %p170 = por %p168, %p169
      %p171 = scmp.ne.s32.totalorder %s162, %s163
      %p172 = scmp.eq.s32.totalorder %s26, 0
      %p173 = por %p171, %p172
      %p174 = scmp.ne.s32.totalorder %s162, %s163
      %p175 = scmp.eq.s32.totalorder %s27, 1
      %p176 = por %p174, %p175
      %p178 = scmp.ne.s32.totalorder %s163, %s177
      %p179 = scmp.eq.s32.totalorder %s27, 0
      %p180 = por %p178, %p179
      %s182 = sadd.s32 %s181, 1
      %p185 = scmp.eq.s32.totalorder %s21, 1
      %p186 = scmp.ne.s32.totalorder %s181, %s183
      %p187 = scmp.eq.s32.totalorder %s21, 0
      %p188 = por %p186, %p187
      %p189 = scmp.ne.s32.totalorder %s181, %s183
      %p190 = scmp.eq.s32.totalorder %s26, 1
      %p191 = por %p189, %p190
      %p192 = scmp.ne.s32.totalorder %s183, %s184
      %p193 = scmp.eq.s32.totalorder %s26, 0
      %p194 = por %p192, %p193
      %p195 = scmp.ne.s32.totalorder %s183, %s184
      %p196 = scmp.eq.s32.totalorder %s27, 1
      %p197 = por %p195, %p196
      %p199 = scmp.ne.s32.totalorder %s184, %s198
      %p200 = scmp.eq.s32.totalorder %s27, 0
      %p201 = por %p199, %p200
      %s203 = sadd.s32 %s202, 1
      %p206 = scmp.eq.s32.totalorder %s21, 1
      %p207 = scmp.ne.s32.totalorder %s202, %s204
      %p208 = scmp.eq.s32.totalorder %s21, 0
      %p209 = por %p207, %p208
      %p210 = scmp.ne.s32.totalorder %s202, %s204
      %p211 = scmp.eq.s32.totalorder %s26, 1
      %p212 = por %p210, %p211
      %p213 = scmp.ne.s32.totalorder %s204, %s205
      %p214 = scmp.eq.s32.totalorder %s26, 0
      %p215 = por %p213, %p214
      %p216 = scmp.ne.s32.totalorder %s204, %s205
      %p217 = scmp.eq.s32.totalorder %s27, 1
      %p218 = por %p216, %p217
      %p220 = scmp.ne.s32.totalorder %s205, %s219
      %p221 = scmp.eq.s32.totalorder %s27, 0
      %p222 = por %p220, %p221
      %s223 = ssub.s32 %s21, %s28
      %p224 = scmp.eq.s32.totalorder %s223, 0
      %s226 = sadd.s32 %s225, 1
      %s227 = scalar_select %p224, %s225, %s226
      %p230 = pneg %p224
      %p231 = scmp.eq.s32.totalorder %s21, 1
      %p232 = por %p230, %p231
      %p233 = scmp.ne.s32.totalorder %s225, %s228
      %p234 = scmp.eq.s32.totalorder %s21, 0
      %p235 = por %p233, %p234
      %p236 = scmp.ne.s32.totalorder %s225, %s228
      %p237 = scmp.eq.s32.totalorder %s26, 1
      %p238 = por %p236, %p237
      %p239 = scmp.ne.s32.totalorder %s228, %s229
      %p240 = scmp.eq.s32.totalorder %s26, 0
      %p241 = por %p239, %p240
      %p242 = scmp.ne.s32.totalorder %s228, %s229
      %p243 = scmp.eq.s32.totalorder %s27, 1
      %p244 = por %p242, %p243
      %p246 = scmp.ne.s32.totalorder %s229, %s245
      %p247 = scmp.eq.s32.totalorder %s27, 0
      %p248 = por %p246, %p247
      %p249 = scmp.le.s32.totalorder 1, %s21
      %p250 = scmp.lt.s32.totalorder %s21, 3
      %p251 = pnand %p249, %p250
      %p252 = pneg %p251
      // Predicated region
      $region9: #{tpu_custom_call.1} parent=5 // pred_check
        _
      $region10: #{tpu_custom_call.1} parent=5 // pred_check_branch
        %254 = sbr.rel (%p251) target = $region12
      $region11: #{tpu_custom_call.1} parent=5 // pred_region
        %s255 = ssub.s32 %s21, 1
        // Predicated region
        $region13: #{tpu_custom_call.1} parent=11 // pred_check
          %p256 = pneg %p68
        $region14: #{tpu_custom_call.1} parent=11 // pred_check_branch
          %258 = sbr.rel (%p256) target = $region16
        $region15: #{tpu_custom_call.1} parent=11 // pred_region
          _
        $region16: #{tpu_custom_call.1} parent=11 // pred_fallthru
          _
        // Predicated region
        $region17: #{tpu_custom_call.1} parent=11 // pred_check
          %p259 = pneg %p89
        $region18: #{tpu_custom_call.1} parent=11 // pred_check_branch
          %261 = sbr.rel (%p259) target = $region20
        $region19: #{tpu_custom_call.1} parent=11 // pred_region
          _
        $region20: #{tpu_custom_call.1} parent=11 // pred_fallthru
          _
        // Predicated region
        $region21: #{tpu_custom_call.1} parent=11 // pred_check
          %p262 = pneg %p110
        $region22: #{tpu_custom_call.1} parent=11 // pred_check_branch
          %264 = sbr.rel (%p262) target = $region24
        $region23: #{tpu_custom_call.1} parent=11 // pred_region
          _
        $region24: #{tpu_custom_call.1} parent=11 // pred_fallthru
          _
        // Predicated region
        $region25: #{tpu_custom_call.1} parent=11 // pred_check
          %p265 = pneg %p131
        $region26: #{tpu_custom_call.1} parent=11 // pred_check_branch
          %267 = sbr.rel (%p265) target = $region28
        $region27: #{tpu_custom_call.1} parent=11 // pred_region
          _
        $region28: #{tpu_custom_call.1} parent=11 // pred_fallthru
          _
        // Predicated region
        $region29: #{tpu_custom_call.1} parent=11 // pred_check
          %p268 = pneg %p152
        $region30: #{tpu_custom_call.1} parent=11 // pred_check_branch
          %270 = sbr.rel (%p268) target = $region32
        $region31: #{tpu_custom_call.1} parent=11 // pred_region
          _
        $region32: #{tpu_custom_call.1} parent=11 // pred_fallthru
          _
        // Predicated region
        $region33: #{tpu_custom_call.1} parent=11 // pred_check
          %p271 = pneg %p173
        $region34: #{tpu_custom_call.1} parent=11 // pred_check_branch
          %273 = sbr.rel (%p271) target = $region36
        $region35: #{tpu_custom_call.1} parent=11 // pred_region
          _
        $region36: #{tpu_custom_call.1} parent=11 // pred_fallthru
          _
        // Predicated region
        $region37: #{tpu_custom_call.1} parent=11 // pred_check
          %p274 = pneg %p194
        $region38: #{tpu_custom_call.1} parent=11 // pred_check_branch
          %276 = sbr.rel (%p274) target = $region40
        $region39: #{tpu_custom_call.1} parent=11 // pred_region
          _
        $region40: #{tpu_custom_call.1} parent=11 // pred_fallthru
          _
        // Predicated region
        $region41: #{tpu_custom_call.1} parent=11 // pred_check
          %p277 = pneg %p215
        $region42: #{tpu_custom_call.1} parent=11 // pred_check_branch
          %279 = sbr.rel (%p277) target = $region44
        $region43: #{tpu_custom_call.1} parent=11 // pred_region
          _
        $region44: #{tpu_custom_call.1} parent=11 // pred_fallthru
          _
      $region12: #{tpu_custom_call.1} parent=5 // pred_fallthru
        _
      %p280 = scmp.lt.s32.totalorder %s21, 2
      // Predicated region
      $region45: #{tpu_custom_call.1} parent=5 // pred_check
        %p281 = pneg %p280
      $region46: #{tpu_custom_call.1} parent=5 // pred_check_branch
        %283 = sbr.rel (%p281) target = $region48
      $region47: #{tpu_custom_call.1} parent=5 // pred_region
        // Predicated region
        $region49: #{tpu_custom_call.1} parent=47 // pred_check
          %p284 = pneg %p41
        $region50: #{tpu_custom_call.1} parent=47 // pred_check_branch
          %286 = sbr.rel (%p284) target = $region52
        $region51: #{tpu_custom_call.1} parent=47 // pred_region
          %s287 = sand.u32 %s31, 1
          %s288 = scalar_lea.sflag [#allocation5], %s287
          %s289 = sand.u32 %s31, 1
          %s290 = smul.addr %s289, 32
          %s291 = scalar_lea.vmem [#allocation4], %s290
          %s293 = ssub.s32 512, 512
          %294 = vsyncadd %s288, %s293
          %s295 = smul.addr %s21, 4
          %s296 = smul.addr %s295, 128
          %s297 = scalar_lea.hbm %s0, %s296
          %s298 = sshll.u32 %s291, 4
          %s299 = int_to_ptr.vmem [resolvable:$true] %s298
          %304 = dma.hbm_to_vmem [thread:$0]  %s297, 512, %s299, %s288, 256, 256, 16
        $region52: #{tpu_custom_call.1} parent=47 // pred_fallthru
          _
      $region48: #{tpu_custom_call.1} parent=5 // pred_fallthru
        _
      %p305 = scmp.le.s32.totalorder 1, %s21
      %p306 = scmp.lt.s32.totalorder %s21, 3
      %p307 = pnand %p305, %p306
      %p308 = pneg %p307
      // Predicated region
      $region53: #{tpu_custom_call.1} parent=5 // pred_check
        _
      $region54: #{tpu_custom_call.1} parent=5 // pred_check_branch
        %310 = sbr.rel (%p307) target = $region56
      $region55: #{tpu_custom_call.1} parent=5 // pred_region
        %s311 = ssub.s32 %s21, 1
        %s312 = sand.u32 %s34, 1
        %s313 = scalar_lea.sflag [#allocation5], %s312
        %s314 = sand.u32 %s34, 1
        %s315 = smul.addr %s314, 32
        %s316 = scalar_lea.vmem [#allocation4], %s315
        // Predicated region
        $region57: #{tpu_custom_call.1} parent=55 // pred_check
          %p317 = pneg %p47
        $region58: #{tpu_custom_call.1} parent=55 // pred_check_branch
          %319 = sbr.rel (%p317) target = $region60
        $region59: #{tpu_custom_call.1} parent=55 // pred_region
          %320 = dma.done %s313, 512
        $region60: #{tpu_custom_call.1} parent=55 // pred_fallthru
          _
        %s321 = sand.u32 %s34, 1
        %s322 = scalar_lea.sflag [#allocation5], %s321
        %s323 = sand.u32 %s34, 1
        %s324 = smul.addr %s323, 32
        %s325 = scalar_lea.vmem [#allocation4], %s324
        %p326 = pneg %p47
        %p327 = pneg %p44
        %p328 = pneg %p68
        %p329 = pneg %p65
        %p330 = pneg %p89
        %p331 = pneg %p86
        %p332 = pneg %p110
        %p333 = pneg %p107
        %p334 = pneg %p131
        %p335 = pneg %p128
        %p336 = pneg %p152
        %p337 = pneg %p149
        %p338 = pneg %p173
        %p339 = pneg %p170
        %p340 = pneg %p194
        %p341 = pneg %p191
        %p342 = pneg %p215
        %p343 = pneg %p212
        %p344 = pneg %p241
        %p345 = pneg %p238
        %s346 = sand.u32 %s228, 1
        %s347 = scalar_lea.sflag [#allocation6], %s346
        %s348 = sand.u32 %s228, 1
        %s349 = smul.addr %s348, 32
        %s350 = scalar_lea.vmem [#allocation7], %s349
        %v351 = vld [vmem:[%s8] sm:$0x1f]
        %v352 = vld [vmem:[%s8 + $0x8] sm:$0x1f]
        %353 = vst [vmem:[#allocation2] sm:$0xf] 0.0
        %354 = vst [vmem:[#allocation2 + $0xc] sm:$0xf] 0.0
        %355 = vst [vmem:[#allocation3] sm:$0xff] 0.0
        %356 = vst [vmem:[#allocation3 + $0x18] sm:$0xff] 0.0
        %v357 = vld [vmem:[%s316] sm:$0xff]
        %v358 = vld [vmem:[%s316 + $0x8] sm:$0xff]
        %v359 = vld [vmem:[%s316 + $0x10] sm:$0xff]
        %v360 = vld [vmem:[%s316 + $0x18] sm:$0xff]
        %v361 = vld [vmem:[%s2] sm:$0xf]
        %v362 = vld [vmem:[%s6] sm:$0xff]
        %v363 = vld [vmem:[%s1] sm:$0xf]
        %365 = vset.pattern.permute.xlu0 0
        %366 = vperm.xlu0 %365, %v361
        %v367 = vpop.permute.xlu0 %366
        %vm369 = vcmask 130048
        %v371 = vsel %vm369, %v363, 0
        %373 = vmatprep.subr.mxu0 %v358
        %374 = vmatpush1.msra.mxu0 %v357
        %375 = vmatprep.subr.mxu0 %v360
        %376 = vmatpush1.msra.mxu0 %v359
        %377 = vmatprep.subr.mxu0 0.0
        %378 = vmatpush1.msra.mxu0 0.0
        %379 = vmatprep.subr.mxu0 0.0
        %380 = vmatpush1.msra.mxu0 0.0
        %381 = vmatprep.subr.mxu0 0.0
        %382 = vmatpush1.msra.mxu0 0.0
        %383 = vmatprep.subr.mxu0 0.0
        %384 = vmatpush1.msra.mxu0 0.0
        %385 = vmatprep.subr.mxu0 0.0
        %386 = vmatpush1.msra.mxu0 0.0
        %387 = vmatprep.subr.mxu0 0.0
        %388 = vmatpush1.msra.mxu0 0.0
        %389 = vmatprep.subr.mxu0 0.0
        %390 = vmatpush1.msra.mxu0 0.0
        %391 = vmatprep.subr.mxu0 0.0
        %392 = vmatpush1.msra.mxu0 0.0
        %393 = vmatprep.subr.mxu0 0.0
        %394 = vmatpush1.msra.mxu0 0.0
        %395 = vmatprep.subr.mxu0 0.0
        %396 = vmatpush1.msra.mxu0 0.0
        %397 = vmatprep.subr.mxu0 0.0
        %398 = vmatpush1.msra.mxu0 0.0
        %399 = vmatprep.subr.mxu0 0.0
        %400 = vmatpush1.msra.mxu0 0.0
        %401 = vmatprep.subr.mxu0 0.0
        %402 = vmatpush1.msra.mxu0 0.0
        %403 = vmatprep.subr.mxu0 0.0
        %404 = vmatpush1.msra.mxu0 0.0
        %405 = vmatprep.subr.mxu0 0.0
        %406 = vmatpush1.msra.mxu0 0.0
        %407 = vmatprep.subr.mxu0 0.0
        %408 = vmatpush1.msra.mxu0 0.0
        %409 = vmatprep.subr.mxu0 0.0
        %410 = vmatpush1.msra.mxu0 0.0
        %411 = vmatprep.subr.mxu0 0.0
        %412 = vmatpush1.msra.mxu0 0.0
        %413 = vmatprep.subr.mxu0 0.0
        %414 = vmatpush1.msra.mxu0 0.0
        %415 = vmatprep.subr.mxu0 0.0
        %416 = vmatpush1.msra.mxu0 0.0
        %417 = vmatprep.subr.mxu0 0.0
        %418 = vmatpush1.msra.mxu0 0.0
        %419 = vmatprep.subr.mxu0 0.0
        %420 = vmatpush1.msra.mxu0 0.0
        %421 = vmatprep.subr.mxu0 0.0
        %422 = vmatpush1.msra.mxu0 0.0
        %423 = vmatprep.subr.mxu0 0.0
        %424 = vmatpush1.msra.mxu0 0.0
        %425 = vmatprep.subr.mxu0 0.0
        %426 = vmatpush1.msra.mxu0 0.0
        %427 = vmatprep.subr.mxu0 0.0
        %428 = vmatpush1.msra.mxu0 0.0
        %429 = vmatprep.subr.mxu0 0.0
        %430 = vmatpush1.msra.mxu0 0.0
        %431 = vmatprep.subr.mxu0 0.0
        %432 = vmatpush1.msra.mxu0 0.0
        %433 = vmatprep.subr.mxu0 0.0
        %434 = vmatpush1.msra.mxu0 0.0
        %435 = vmatprep.subr.mxu0 0.0
        %436 = vmatpush1.msra.mxu0 0.0
        %437 = vmatprep.mubr.f32.mxu0 0.0
        %438 = vmatmul.mubr.f32.gmra.mrb[0].mxu0 %v371
        %v439 = vpop.f32.mrb[0].mxu0
        %v440 = vadd.f32 %v367, %v439
        %v441 = vpop.f32.mrb[0].mxu0
        %v442 = vadd.f32 %v367, %v441
        %443 = vdwg.mxu0
        %v444 = vsub.f32 0.0, %v440
        %v445 = vsub.f32 0.0, %v442
        %v446 = vmul.f32 %v444, 1.442695
        %v447 = vpow.pop %v446
        %v448 = vmul.f32 %v445, 1.442695
        %v449 = vpow.pop %v448
        %v450 = vadd.f32 %v447, 1.0
        %v451 = vadd.f32 %v449, 1.0
        %v452 = vrcp.pop %v450
        %v453 = vrcp.pop %v451
        %v454 = vmul.f32 %v440, %v452
        %v455 = vmul.f32 %v442, %v453
        %v458 = vcombine.low %v454, %v455
        %460 = vst [vmem:[#allocation2 + $0x4] sm:$0xff] %v458
        %v461 = vld [vmem:[%s4] sm:$0xff]
        %v462 = vld [vmem:[%s3] sm:$0xf]
        %v463 = vld [vmem:[#allocation2] sm:$0xff]
        %v464 = vld [vmem:[#allocation2 + $0x8] sm:$0xf]
        %466 = vset.pattern.permute.xlu0 0
        %467 = vperm.xlu0 %466, %v462
        %v468 = vpop.permute.xlu0 %467
        %v470 = vunpack.c.l.s4 839922192
        %v471 = vunpack.c.0.s8 %v470
        %v472 = vlaneseq
        %v473 = vshrl.u32 %v472, 7
        %v474 = vsub.s32 %v471, %v473
        %v475 = vrot.slane %v468, %v474
        %v477 = vmul.f32 %v463, %v475
        %v478 = vmul.f32 %v464, %v475
        %479 = vset.pattern.permute.xlu0 5
        %480 = vperm.xlu0 %479, %v462
        %v481 = vpop.permute.xlu0 %480
        %v483 = vunpack.c.l.s4 839922192
        %v484 = vunpack.c.0.s8 %v483
        %v485 = vlaneseq
        %v486 = vshrl.u32 %v485, 7
        %v487 = vsub.s32 %v484, %v486
        %v488 = vrot.slane %v481, %v487
        %v490 = vmul.f32 %v463, %v488
        %v491 = vmul.f32 %v464, %v488
        %494 = vrot.lane.b32.xlu0 %v490, 112
        %v495 = vpop.permute.xlu0 %494
        %496 = vrot.lane.b32.xlu0 %v491, 112
        %v497 = vpop.permute.xlu0 %496
        %v498 = vrot.slane %v495, 4
        %v499 = vrot.slane %v497, 4
        %vm500 = vcmask 1043456
        %v501 = vsel %vm500, %v498, %v499
        %vm502 = vcmask 916480
        %v503 = vsel %vm502, %v495, %v501
        %v506 = vadd.f32 %v477, %v503
        %v507 = vadd.f32 %v478, %v497
        %508 = vset.pattern.permute.xlu0 10
        %509 = vperm.xlu0 %508, %v462
        %v510 = vpop.permute.xlu0 %509
        %v512 = vunpack.c.l.s4 839922192
        %v513 = vunpack.c.0.s8 %v512
        %v514 = vlaneseq
        %v515 = vshrl.u32 %v514, 7
        %v516 = vsub.s32 %v513, %v515
        %v517 = vrot.slane %v510, %v516
        %v519 = vmul.f32 %v463, %v517
        %v520 = vmul.f32 %v464, %v517
        %523 = vrot.lane.b32.xlu0 %v519, 96
        %v524 = vpop.permute.xlu0 %523
        %525 = vrot.lane.b32.xlu0 %v520, 96
        %v526 = vpop.permute.xlu0 %525
        %v527 = vrot.slane %v524, 4
        %v528 = vrot.slane %v526, 4
        %v529 = vsel %vm500, %v527, %v528
        %vm530 = vcmask 785408
        %v531 = vsel %vm530, %v524, %v529
        %v534 = vadd.f32 %v506, %v531
        %v535 = vadd.f32 %v507, %v526
        %v536 = vld [vmem:[#allocation2 + $0x4] sm:$0xff]
        %v537 = vld [vmem:[#allocation2 + $0xc] sm:$0xf]
        %538 = vset.pattern.permute.xlu0 15
        %539 = vperm.xlu0 %538, %v462
        %v540 = vpop.permute.xlu0 %539
        %v542 = vunpack.c.l.s4 839922192
        %v543 = vunpack.c.0.s8 %v542
        %v544 = vlaneseq
        %v545 = vshrl.u32 %v544, 7
        %v546 = vsub.s32 %v543, %v545
        %v547 = vrot.slane %v540, %v546
        %v549 = vmul.f32 %v536, %v547
        %v550 = vmul.f32 %v537, %v547
        %553 = vrot.lane.b32.xlu0 %v549, 80
        %v554 = vpop.permute.xlu0 %553
        %555 = vrot.lane.b32.xlu0 %v550, 80
        %v556 = vpop.permute.xlu0 %555
        %v557 = vrot.slane %v554, 4
        %vm558 = vcmask 654336
        %v559 = vsel %vm558, %v557, %v554
        %v560 = vsel %vm558, %v557, %v556
        %v563 = vadd.f32 %v534, %v559
        %v564 = vadd.f32 %v535, %v560
        %565 = vset.pattern.permute.xlu0 20
        %566 = vperm.xlu0 %565, %v462
        %v567 = vpop.permute.xlu0 %566
        %v569 = vunpack.c.l.s4 839922192
        %v570 = vunpack.c.0.s8 %v569
        %v571 = vlaneseq
        %v572 = vshrl.u32 %v571, 7
        %v573 = vsub.s32 %v570, %v572
        %v574 = vrot.slane %v567, %v573
        %v576 = vmul.f32 %v536, %v574
        %v577 = vmul.f32 %v537, %v574
        %580 = vrot.lane.b32.xlu0 %v576, 64
        %v581 = vpop.permute.xlu0 %580
        %582 = vrot.lane.b32.xlu0 %v577, 64
        %v583 = vpop.permute.xlu0 %582
        %v584 = vrot.slane %v581, 4
        %vm585 = vcmask 523264
        %v586 = vsel %vm585, %v584, %v581
        %v587 = vsel %vm585, %v584, %v583
        %v590 = vadd.f32 %v563, %v586
        %v591 = vadd.f32 %v564, %v587
        %v592 = vlaneseq
        %v593 = vshrl.u32 %v592, 7
        %v594 = vsub.s32 0, %v593
        %v595 = vrot.slane %v351, %v594
        %v596 = vlaneseq
        %v597 = vshrl.u32 %v596, 7
        %v598 = vsub.s32 0, %v597
        %v599 = vrot.slane %v352, %v598
        %v602 = vcombine.low %v595, %v599
        %603 = vrot.lane.b32.xlu0 %v602, 94
        %v604 = vpop.permute.xlu0 %603
        %v605 = vrot.slane %v604, 4
        %vm606 = vcmask 769024
        %v607 = vsel %vm606, %v605, %v604
        %v610 = vmul.f32 %v590, %v607
        %v611 = vmul.f32 %v591, %v605
        %v612 = vld [vmem:[#allocation2] sm:$0xff]
        %v613 = vld [vmem:[#allocation2 + $0x8] sm:$0xf]
        %614 = vset.pattern.permute.xlu0 1
        %615 = vperm.xlu0 %614, %v462
        %v616 = vpop.permute.xlu0 %615
        %v618 = vunpack.c.l.s4 839922192
        %v619 = vunpack.c.0.s8 %v618
        %v620 = vlaneseq
        %v621 = vshrl.u32 %v620, 7
        %v622 = vsub.s32 %v619, %v621
        %v623 = vrot.slane %v616, %v622
        %v625 = vmul.f32 %v612, %v623
        %v626 = vmul.f32 %v613, %v623
        %627 = vset.pattern.permute.xlu0 6
        %628 = vperm.xlu0 %627, %v462
        %v629 = vpop.permute.xlu0 %628
        %v631 = vunpack.c.l.s4 839922192
        %v632 = vunpack.c.0.s8 %v631
        %v633 = vlaneseq
        %v634 = vshrl.u32 %v633, 7
        %v635 = vsub.s32 %v632, %v634
        %v636 = vrot.slane %v629, %v635
        %v638 = vmul.f32 %v612, %v636
        %v639 = vmul.f32 %v613, %v636
        %642 = vrot.lane.b32.xlu0 %v638, 112
        %v643 = vpop.permute.xlu0 %642
        %644 = vrot.lane.b32.xlu0 %v639, 112
        %v645 = vpop.permute.xlu0 %644
        %v646 = vrot.slane %v643, 4
        %v647 = vrot.slane %v645, 4
        %v648 = vsel %vm500, %v646, %v647
        %v649 = vsel %vm502, %v643, %v648
        %v652 = vadd.f32 %v625, %v649
        %v653 = vadd.f32 %v626, %v645
        %654 = vset.pattern.permute.xlu0 11
        %655 = vperm.xlu0 %654, %v462
        %v656 = vpop.permute.xlu0 %655
        %v658 = vunpack.c.l.s4 839922192
        %v659 = vunpack.c.0.s8 %v658
        %v660 = vlaneseq
        %v661 = vshrl.u32 %v660, 7
        %v662 = vsub.s32 %v659, %v661
        %v663 = vrot.slane %v656, %v662
        %v665 = vmul.f32 %v612, %v663
        %v666 = vmul.f32 %v613, %v663
        %669 = vrot.lane.b32.xlu0 %v665, 96
        %v670 = vpop.permute.xlu0 %669
        %671 = vrot.lane.b32.xlu0 %v666, 96
        %v672 = vpop.permute.xlu0 %671
        %v673 = vrot.slane %v670, 4
        %v674 = vrot.slane %v672, 4
        %v675 = vsel %vm500, %v673, %v674
        %v676 = vsel %vm530, %v670, %v675
        %v679 = vadd.f32 %v652, %v676
        %v680 = vadd.f32 %v653, %v672
        %v681 = vld [vmem:[#allocation2 + $0x4] sm:$0xff]
        %v682 = vld [vmem:[#allocation2 + $0xc] sm:$0xf]
        %683 = vset.pattern.permute.xlu0 16
        %684 = vperm.xlu0 %683, %v462
        %v685 = vpop.permute.xlu0 %684
        %v687 = vunpack.c.l.s4 839922192
        %v688 = vunpack.c.0.s8 %v687
        %v689 = vlaneseq
        %v690 = vshrl.u32 %v689, 7
        %v691 = vsub.s32 %v688, %v690
        %v692 = vrot.slane %v685, %v691
        %v694 = vmul.f32 %v681, %v692
        %v695 = vmul.f32 %v682, %v692
        %698 = vrot.lane.b32.xlu0 %v694, 80
        %v699 = vpop.permute.xlu0 %698
        %700 = vrot.lane.b32.xlu0 %v695, 80
        %v701 = vpop.permute.xlu0 %700
        %v702 = vrot.slane %v699, 4
        %v703 = vsel %vm558, %v702, %v699
        %v704 = vsel %vm558, %v702, %v701
        %v707 = vadd.f32 %v679, %v703
        %v708 = vadd.f32 %v680, %v704
        %709 = vset.pattern.permute.xlu0 21
        %710 = vperm.xlu0 %709, %v462
        %v711 = vpop.permute.xlu0 %710
        %v713 = vunpack.c.l.s4 839922192
        %v714 = vunpack.c.0.s8 %v713
        %v715 = vlaneseq
        %v716 = vshrl.u32 %v715, 7
        %v717 = vsub.s32 %v714, %v716
        %v718 = vrot.slane %v711, %v717
        %v720 = vmul.f32 %v681, %v718
        %v721 = vmul.f32 %v682, %v718
        %724 = vrot.lane.b32.xlu0 %v720, 64
        %v725 = vpop.permute.xlu0 %724
        %726 = vrot.lane.b32.xlu0 %v721, 64
        %v727 = vpop.permute.xlu0 %726
        %v728 = vrot.slane %v725, 4
        %v729 = vsel %vm585, %v728, %v725
        %v730 = vsel %vm585, %v728, %v727
        %v733 = vadd.f32 %v707, %v729
        %v734 = vadd.f32 %v708, %v730
        %v735 = vlaneseq
        %v736 = vshrl.u32 %v735, 7
        %v737 = vsub.s32 1, %v736
        %v738 = vrot.slane %v351, %v737
        %v739 = vlaneseq
        %v740 = vshrl.u32 %v739, 7
        %v741 = vsub.s32 1, %v740
        %v742 = vrot.slane %v352, %v741
        %v745 = vcombine.low %v738, %v742
        %746 = vrot.lane.b32.xlu0 %v745, 95
        %v747 = vpop.permute.xlu0 %746
        %v748 = vrot.slane %v747, 4
        %vm749 = vcmask 777216
        %v750 = vsel %vm749, %v748, %v747
        %v753 = vmul.f32 %v733, %v750
        %v754 = vmul.f32 %v734, %v748
        %757 = vrot.lane.b32.xlu0 %v753, 127
        %v758 = vpop.permute.xlu0 %757
        %759 = vrot.lane.b32.xlu0 %v754, 127
        %v760 = vpop.permute.xlu0 %759
        %v761 = vrot.slane %v758, 4
        %v762 = vrot.slane %v760, 4
        %v763 = vsel %vm500, %v761, %v762
        %vm764 = vcmask 1039360
        %v765 = vsel %vm764, %v758, %v763
        %v768 = vadd.f32 %v610, %v765
        %v769 = vadd.f32 %v611, %v760
        %v770 = vld [vmem:[#allocation2] sm:$0xff]
        %v771 = vld [vmem:[#allocation2 + $0x8] sm:$0xf]
        %772 = vset.pattern.permute.xlu0 2
        %773 = vperm.xlu0 %772, %v462
        %v774 = vpop.permute.xlu0 %773
        %v776 = vunpack.c.l.s4 839922192
        %v777 = vunpack.c.0.s8 %v776
        %v778 = vlaneseq
        %v779 = vshrl.u32 %v778, 7
        %v780 = vsub.s32 %v777, %v779
        %v781 = vrot.slane %v774, %v780
        %v783 = vmul.f32 %v770, %v781
        %v784 = vmul.f32 %v771, %v781
        %785 = vset.pattern.permute.xlu0 7
        %786 = vperm.xlu0 %785, %v462
        %v787 = vpop.permute.xlu0 %786
        %v789 = vunpack.c.l.s4 839922192
        %v790 = vunpack.c.0.s8 %v789
        %v791 = vlaneseq
        %v792 = vshrl.u32 %v791, 7
        %v793 = vsub.s32 %v790, %v792
        %v794 = vrot.slane %v787, %v793
        %v796 = vmul.f32 %v770, %v794
        %v797 = vmul.f32 %v771, %v794
        %800 = vrot.lane.b32.xlu0 %v796, 112
        %v801 = vpop.permute.xlu0 %800
        %802 = vrot.lane.b32.xlu0 %v797, 112
        %v803 = vpop.permute.xlu0 %802
        %v804 = vrot.slane %v801, 4
        %v805 = vrot.slane %v803, 4
        %v806 = vsel %vm500, %v804, %v805
        %v807 = vsel %vm502, %v801, %v806
        %v810 = vadd.f32 %v783, %v807
        %v811 = vadd.f32 %v784, %v803
        %v812 = vld [vmem:[#allocation2 + $0x4] sm:$0xff]
        %813 = vset.pattern.permute.xlu0 12
        %814 = vperm.xlu0 %813, %v462
        %v815 = vpop.permute.xlu0 %814
        %v817 = vunpack.c.l.s4 839922192
        %v818 = vunpack.c.0.s8 %v817
        %v819 = vlaneseq
        %v820 = vshrl.u32 %v819, 7
        %v821 = vsub.s32 %v818, %v820
        %v822 = vrot.slane %v815, %v821
        %v824 = vmul.f32 %v812, %v822
        %826 = vrot.lane.b32.xlu0 %v824, 96
        %v827 = vpop.permute.xlu0 %826
        %v828 = vrot.slane %v827, 4
        %v829 = vsel %vm530, %v828, %v827
        %v832 = vadd.f32 %v810, %v829
        %v833 = vadd.f32 %v811, %v828
        %v834 = vld [vmem:[#allocation2 + $0x4] sm:$0xff]
        %v835 = vld [vmem:[#allocation2 + $0xc] sm:$0xf]
        %836 = vset.pattern.permute.xlu0 17
        %837 = vperm.xlu0 %836, %v462
        %v838 = vpop.permute.xlu0 %837
        %v840 = vunpack.c.l.s4 839922192
        %v841 = vunpack.c.0.s8 %v840
        %v842 = vlaneseq
        %v843 = vshrl.u32 %v842, 7
        %v844 = vsub.s32 %v841, %v843
        %v845 = vrot.slane %v838, %v844
        %v847 = vmul.f32 %v834, %v845
        %v848 = vmul.f32 %v835, %v845
        %851 = vrot.lane.b32.xlu0 %v847, 80
        %v852 = vpop.permute.xlu0 %851
        %853 = vrot.lane.b32.xlu0 %v848, 80
        %v854 = vpop.permute.xlu0 %853
        %v855 = vrot.slane %v852, 4
        %v856 = vsel %vm558, %v855, %v852
        %v857 = vsel %vm558, %v855, %v854
        %v860 = vadd.f32 %v832, %v856
        %v861 = vadd.f32 %v833, %v857
        %862 = vset.pattern.permute.xlu0 22
        %863 = vperm.xlu0 %862, %v462
        %v864 = vpop.permute.xlu0 %863
        %v866 = vunpack.c.l.s4 839922192
        %v867 = vunpack.c.0.s8 %v866
        %v868 = vlaneseq
        %v869 = vshrl.u32 %v868, 7
        %v870 = vsub.s32 %v867, %v869
        %v871 = vrot.slane %v864, %v870
        %v873 = vmul.f32 %v834, %v871
        %v874 = vmul.f32 %v835, %v871
        %877 = vrot.lane.b32.xlu0 %v873, 64
        %v878 = vpop.permute.xlu0 %877
        %879 = vrot.lane.b32.xlu0 %v874, 64
        %v880 = vpop.permute.xlu0 %879
        %v881 = vrot.slane %v878, 4
        %v882 = vsel %vm585, %v881, %v878
        %v883 = vsel %vm585, %v881, %v880
        %v886 = vadd.f32 %v860, %v882
        %v887 = vadd.f32 %v861, %v883
        %890 = vrot.lane.b32.xlu0 %v886, 126
        %v891 = vpop.permute.xlu0 %890
        %892 = vrot.lane.b32.xlu0 %v887, 126
        %v893 = vpop.permute.xlu0 %892
        %v894 = vrot.slane %v891, 4
        %v895 = vrot.slane %v893, 4
        %v896 = vsel %vm500, %v894, %v895
        %vm897 = vcmask 1031168
        %v898 = vsel %vm897, %v891, %v896
        %v901 = vadd.f32 %v768, %v898
        %v902 = vadd.f32 %v769, %v893
        %903 = vset.pattern.permute.xlu0 3
        %904 = vperm.xlu0 %903, %v462
        %v905 = vpop.permute.xlu0 %904
        %v907 = vunpack.c.l.s4 839922192
        %v908 = vunpack.c.0.s8 %v907
        %v909 = vlaneseq
        %v910 = vshrl.u32 %v909, 7
        %v911 = vsub.s32 %v908, %v910
        %v912 = vrot.slane %v905, %v911
        %v914 = vmul.f32 %v770, %v912
        %v915 = vmul.f32 %v771, %v912
        %916 = vset.pattern.permute.xlu0 8
        %917 = vperm.xlu0 %916, %v462
        %v918 = vpop.permute.xlu0 %917
        %v920 = vunpack.c.l.s4 839922192
        %v921 = vunpack.c.0.s8 %v920
        %v922 = vlaneseq
        %v923 = vshrl.u32 %v922, 7
        %v924 = vsub.s32 %v921, %v923
        %v925 = vrot.slane %v918, %v924
        %v927 = vmul.f32 %v770, %v925
        %v928 = vmul.f32 %v771, %v925
        %931 = vrot.lane.b32.xlu0 %v927, 112
        %v932 = vpop.permute.xlu0 %931
        %933 = vrot.lane.b32.xlu0 %v928, 112
        %v934 = vpop.permute.xlu0 %933
        %v935 = vrot.slane %v932, 4
        %v936 = vrot.slane %v934, 4
        %v937 = vsel %vm500, %v935, %v936
        %v938 = vsel %vm502, %v932, %v937
        %v941 = vadd.f32 %v914, %v938
        %v942 = vadd.f32 %v915, %v934
        %943 = vset.pattern.permute.xlu0 13
        %944 = vperm.xlu0 %943, %v462
        %v945 = vpop.permute.xlu0 %944
        %v947 = vunpack.c.l.s4 839922192
        %v948 = vunpack.c.0.s8 %v947
        %v949 = vlaneseq
        %v950 = vshrl.u32 %v949, 7
        %v951 = vsub.s32 %v948, %v950
        %v952 = vrot.slane %v945, %v951
        %v954 = vmul.f32 %v834, %v952
        %v955 = vmul.f32 %v835, %v952
        %958 = vrot.lane.b32.xlu0 %v954, 96
        %v959 = vpop.permute.xlu0 %958
        %960 = vrot.lane.b32.xlu0 %v955, 96
        %v961 = vpop.permute.xlu0 %960
        %v962 = vrot.slane %v959, 4
        %v963 = vsel %vm530, %v962, %v959
        %v964 = vsel %vm530, %v962, %v961
        %v967 = vadd.f32 %v941, %v963
        %v968 = vadd.f32 %v942, %v964
        %969 = vset.pattern.permute.xlu0 18
        %970 = vperm.xlu0 %969, %v462
        %v971 = vpop.permute.xlu0 %970
        %v973 = vunpack.c.l.s4 839922192
        %v974 = vunpack.c.0.s8 %v973
        %v975 = vlaneseq
        %v976 = vshrl.u32 %v975, 7
        %v977 = vsub.s32 %v974, %v976
        %v978 = vrot.slane %v971, %v977
        %v980 = vmul.f32 %v834, %v978
        %v981 = vmul.f32 %v835, %v978
        %984 = vrot.lane.b32.xlu0 %v980, 80
        %v985 = vpop.permute.xlu0 %984
        %986 = vrot.lane.b32.xlu0 %v981, 80
        %v987 = vpop.permute.xlu0 %986
        %v988 = vrot.slane %v985, 4
        %v989 = vsel %vm558, %v988, %v985
        %v990 = vsel %vm558, %v988, %v987
        %v993 = vadd.f32 %v967, %v989
        %v994 = vadd.f32 %v968, %v990
        %995 = vset.pattern.permute.xlu0 23
        %996 = vperm.xlu0 %995, %v462
        %v997 = vpop.permute.xlu0 %996
        %v999 = vunpack.c.l.s4 839922192
        %v1000 = vunpack.c.0.s8 %v999
        %v1001 = vlaneseq
        %v1002 = vshrl.u32 %v1001, 7
        %v1003 = vsub.s32 %v1000, %v1002
        %v1004 = vrot.slane %v997, %v1003
        %v1006 = vmul.f32 %v834, %v1004
        %v1007 = vmul.f32 %v835, %v1004
        %1010 = vrot.lane.b32.xlu0 %v1006, 64
        %v1011 = vpop.permute.xlu0 %1010
        %1012 = vrot.lane.b32.xlu0 %v1007, 64
        %v1013 = vpop.permute.xlu0 %1012
        %v1014 = vrot.slane %v1011, 4
        %v1015 = vsel %vm585, %v1014, %v1011
        %v1016 = vsel %vm585, %v1014, %v1013
        %v1019 = vadd.f32 %v993, %v1015
        %v1020 = vadd.f32 %v994, %v1016
        %v1021 = vlaneseq
        %v1022 = vshrl.u32 %v1021, 7
        %v1023 = vsub.s32 3, %v1022
        %v1024 = vrot.slane %v351, %v1023
        %v1025 = vlaneseq
        %v1026 = vshrl.u32 %v1025, 7
        %v1027 = vsub.s32 3, %v1026
        %v1028 = vrot.slane %v352, %v1027
        %v1031 = vcombine.low %v1024, %v1028
        %1032 = vrot.lane.b32.xlu0 %v1031, 97
        %v1033 = vpop.permute.xlu0 %1032
        %v1034 = vrot.slane %v1033, 4
        %vm1035 = vcmask 793600
        %v1036 = vsel %vm1035, %v1034, %v1033
        %v1039 = vmul.f32 %v1019, %v1036
        %v1040 = vmul.f32 %v1020, %v1034
        %1043 = vrot.lane.b32.xlu0 %v1039, 125
        %v1044 = vpop.permute.xlu0 %1043
        %1045 = vrot.lane.b32.xlu0 %v1040, 125
        %v1046 = vpop.permute.xlu0 %1045
        %v1047 = vrot.slane %v1044, 4
        %v1048 = vrot.slane %v1046, 4
        %v1049 = vsel %vm500, %v1047, %v1048
        %vm1050 = vcmask 1022976
        %v1051 = vsel %vm1050, %v1044, %v1049
        %v1054 = vadd.f32 %v901, %v1051
        %v1055 = vadd.f32 %v902, %v1046
        %v1056 = vld [vmem:[#allocation2] sm:$0xff]
        %v1057 = vld [vmem:[#allocation2 + $0x8] sm:$0xf]
        %1058 = vset.pattern.permute.xlu0 4
        %1059 = vperm.xlu0 %1058, %v462
        %v1060 = vpop.permute.xlu0 %1059
        %v1062 = vunpack.c.l.s4 839922192
        %v1063 = vunpack.c.0.s8 %v1062
        %v1064 = vlaneseq
        %v1065 = vshrl.u32 %v1064, 7
        %v1066 = vsub.s32 %v1063, %v1065
        %v1067 = vrot.slane %v1060, %v1066
        %v1069 = vmul.f32 %v1056, %v1067
        %v1070 = vmul.f32 %v1057, %v1067
        %1071 = vset.pattern.permute.xlu0 9
        %1072 = vperm.xlu0 %1071, %v462
        %v1073 = vpop.permute.xlu0 %1072
        %v1075 = vunpack.c.l.s4 839922192
        %v1076 = vunpack.c.0.s8 %v1075
        %v1077 = vlaneseq
        %v1078 = vshrl.u32 %v1077, 7
        %v1079 = vsub.s32 %v1076, %v1078
        %v1080 = vrot.slane %v1073, %v1079
        %v1082 = vmul.f32 %v1056, %v1080
        %v1083 = vmul.f32 %v1057, %v1080
        %1086 = vrot.lane.b32.xlu0 %v1082, 112
        %v1087 = vpop.permute.xlu0 %1086
        %1088 = vrot.lane.b32.xlu0 %v1083, 112
        %v1089 = vpop.permute.xlu0 %1088
        %v1090 = vrot.slane %v1087, 4
        %v1091 = vrot.slane %v1089, 4
        %v1092 = vsel %vm500, %v1090, %v1091
        %v1093 = vsel %vm502, %v1087, %v1092
        %v1096 = vadd.f32 %v1069, %v1093
        %v1097 = vadd.f32 %v1070, %v1089
        %v1098 = vld [vmem:[#allocation2 + $0x4] sm:$0xff]
        %v1099 = vld [vmem:[#allocation2 + $0xc] sm:$0xf]
        %1100 = vset.pattern.permute.xlu0 14
        %1101 = vperm.xlu0 %1100, %v462
        %v1102 = vpop.permute.xlu0 %1101
        %v1104 = vunpack.c.l.s4 839922192
        %v1105 = vunpack.c.0.s8 %v1104
        %v1106 = vlaneseq
        %v1107 = vshrl.u32 %v1106, 7
        %v1108 = vsub.s32 %v1105, %v1107
        %v1109 = vrot.slane %v1102, %v1108
        %v1111 = vmul.f32 %v1098, %v1109
        %v1112 = vmul.f32 %v1099, %v1109
        %1115 = vrot.lane.b32.xlu0 %v1111, 96
        %v1116 = vpop.permute.xlu0 %1115
        %1117 = vrot.lane.b32.xlu0 %v1112, 96
        %v1118 = vpop.permute.xlu0 %1117
        %v1119 = vrot.slane %v1116, 4
        %v1120 = vsel %vm530, %v1119, %v1116
        %v1121 = vsel %vm530, %v1119, %v1118
        %v1124 = vadd.f32 %v1096, %v1120
        %v1125 = vadd.f32 %v1097, %v1121
        %1126 = vset.pattern.permute.xlu0 19
        %1127 = vperm.xlu0 %1126, %v462
        %v1128 = vpop.permute.xlu0 %1127
        %v1130 = vunpack.c.l.s4 839922192
        %v1131 = vunpack.c.0.s8 %v1130
        %v1132 = vlaneseq
        %v1133 = vshrl.u32 %v1132, 7
        %v1134 = vsub.s32 %v1131, %v1133
        %v1135 = vrot.slane %v1128, %v1134
        %v1137 = vmul.f32 %v1098, %v1135
        %v1138 = vmul.f32 %v1099, %v1135
        %1141 = vrot.lane.b32.xlu0 %v1137, 80
        %v1142 = vpop.permute.xlu0 %1141
        %1143 = vrot.lane.b32.xlu0 %v1138, 80
        %v1144 = vpop.permute.xlu0 %1143
        %v1145 = vrot.slane %v1142, 4
        %v1146 = vsel %vm558, %v1145, %v1142
        %v1147 = vsel %vm558, %v1145, %v1144
        %v1150 = vadd.f32 %v1124, %v1146
        %v1151 = vadd.f32 %v1125, %v1147
        %1152 = vset.pattern.permute.xlu0 24
        %1153 = vperm.xlu0 %1152, %v462
        %v1154 = vpop.permute.xlu0 %1153
        %v1156 = vunpack.c.l.s4 839922192
        %v1157 = vunpack.c.0.s8 %v1156
        %v1158 = vlaneseq
        %v1159 = vshrl.u32 %v1158, 7
        %v1160 = vsub.s32 %v1157, %v1159
        %v1161 = vrot.slane %v1154, %v1160
        %v1163 = vmul.f32 %v1098, %v1161
        %v1164 = vmul.f32 %v1099, %v1161
        %1167 = vrot.lane.b32.xlu0 %v1163, 64
        %v1168 = vpop.permute.xlu0 %1167
        %1169 = vrot.lane.b32.xlu0 %v1164, 64
        %v1170 = vpop.permute.xlu0 %1169
        %v1171 = vrot.slane %v1168, 4
        %v1172 = vsel %vm585, %v1171, %v1168
        %v1173 = vsel %vm585, %v1171, %v1170
        %v1176 = vadd.f32 %v1150, %v1172
        %v1177 = vadd.f32 %v1151, %v1173
        %v1178 = vlaneseq
        %v1179 = vshrl.u32 %v1178, 7
        %v1180 = vsub.s32 4, %v1179
        %v1181 = vrot.slane %v351, %v1180
        %v1182 = vlaneseq
        %v1183 = vshrl.u32 %v1182, 7
        %v1184 = vsub.s32 4, %v1183
        %v1185 = vrot.slane %v352, %v1184
        %v1188 = vcombine.low %v1181, %v1185
        %1189 = vrot.lane.b32.xlu0 %v1188, 98
        %v1190 = vpop.permute.xlu0 %1189
        %v1191 = vrot.slane %v1190, 4
        %vm1192 = vcmask 801792
        %v1193 = vsel %vm1192, %v1191, %v1190
        %v1196 = vmul.f32 %v1176, %v1193
        %v1197 = vmul.f32 %v1177, %v1191
        %1200 = vrot.lane.b32.xlu0 %v1196, 124
        %v1201 = vpop.permute.xlu0 %1200
        %1202 = vrot.lane.b32.xlu0 %v1197, 124
        %v1203 = vpop.permute.xlu0 %1202
        %v1204 = vrot.slane %v1201, 4
        %v1205 = vrot.slane %v1203, 4
        %v1206 = vsel %vm500, %v1204, %v1205
        %vm1207 = vcmask 1014784
        %v1208 = vsel %vm1207, %v1201, %v1206
        %v1211 = vadd.f32 %v1054, %v1208
        %v1212 = vadd.f32 %v1055, %v1203
        %1213 = vset.pattern.permute.xlu0 1
        %1214 = vperm.xlu0 %1213, %v361
        %v1215 = vpop.permute.xlu0 %1214
        %v1217 = vunpack.c.l.s4 839922192
        %v1218 = vunpack.c.0.s8 %v1217
        %v1219 = vlaneseq
        %v1220 = vshrl.u32 %v1219, 7
        %v1221 = vsub.s32 %v1218, %v1220
        %v1222 = vrot.slane %v1215, %v1221
        %v1224 = vadd.f32 %v1211, %v1222
        %v1225 = vadd.f32 %v1212, %v1222
        %v1226 = vsub.f32 0.0, %v1224
        %v1227 = vsub.f32 0.0, %v1225
        %v1228 = vmul.f32 %v1226, 1.442695
        %v1229 = vpow.pop %v1228
        %v1230 = vmul.f32 %v1227, 1.442695
        %v1231 = vpow.pop %v1230
        %v1232 = vadd.f32 %v1229, 1.0
        %v1233 = vadd.f32 %v1231, 1.0
        %v1234 = vrcp.pop %v1232
        %v1235 = vrcp.pop %v1233
        %v1236 = vmul.f32 %v1224, %v1234
        %v1237 = vmul.f32 %v1225, %v1235
        %v1238 = vld [vmem:[%s5] sm:$0xff]
        %v1241 = vcombine.high %v1236, %v1236
        %1242 = vrot.lane.b32.xlu0 %v1236, 34
        %v1243 = vpop.permute.xlu0 %1242
        %1244 = vrot.lane.b32.xlu0 %v1241, 34
        %v1245 = vpop.permute.xlu0 %1244
        %1246 = vrot.lane.b32.xlu0 %v1237, 34
        %v1247 = vpop.permute.xlu0 %1246
        %vm1248 = vcmask 277504
        %v1249 = vsel %vm1248, %v1243, %v1245
        %v1250 = vsel %vm1248, %v1245, %v1247
        %vm1251 = vcmask 31744
        %v1253 = vsel %vm1251, %v1238, 0
        %v1255 = vsel %vm500, %v1249, 0
        %v1257 = vsel %vm500, %v1250, 0
        %1259 = vmatprep.subr.mxu0 %v1257
        %1260 = vmatpush1.msra.mxu0 %v1255
        %1261 = vmatprep.subr.mxu0 0.0
        %1262 = vmatpush1.msra.mxu0 0.0
        %1263 = vmatprep.subr.mxu0 0.0
        %1264 = vmatpush1.msra.mxu0 0.0
        %1265 = vmatprep.subr.mxu0 0.0
        %1266 = vmatpush1.msra.mxu0 0.0
        %1267 = vmatprep.subr.mxu0 0.0
        %1268 = vmatpush1.msra.mxu0 0.0
        %1269 = vmatprep.subr.mxu0 0.0
        %1270 = vmatpush1.msra.mxu0 0.0
        %1271 = vmatprep.subr.mxu0 0.0
        %1272 = vmatpush1.msra.mxu0 0.0
        %1273 = vmatprep.subr.mxu0 0.0
        %1274 = vmatpush1.msra.mxu0 0.0
        %1275 = vmatprep.subr.mxu0 0.0
        %1276 = vmatpush1.msra.mxu0 0.0
        %1277 = vmatprep.subr.mxu0 0.0
        %1278 = vmatpush1.msra.mxu0 0.0
        %1279 = vmatprep.subr.mxu0 0.0
        %1280 = vmatpush1.msra.mxu0 0.0
        %1281 = vmatprep.subr.mxu0 0.0
        %1282 = vmatpush1.msra.mxu0 0.0
        %1283 = vmatprep.subr.mxu0 0.0
        %1284 = vmatpush1.msra.mxu0 0.0
        %1285 = vmatprep.subr.mxu0 0.0
        %1286 = vmatpush1.msra.mxu0 0.0
        %1287 = vmatprep.subr.mxu0 0.0
        %1288 = vmatpush1.msra.mxu0 0.0
        %1289 = vmatprep.subr.mxu0 0.0
        %1290 = vmatpush1.msra.mxu0 0.0
        %1291 = vmatprep.subr.mxu0 0.0
        %1292 = vmatpush1.msra.mxu0 0.0
        %1293 = vmatprep.subr.mxu0 0.0
        %1294 = vmatpush1.msra.mxu0 0.0
        %1295 = vmatprep.subr.mxu0 0.0
        %1296 = vmatpush1.msra.mxu0 0.0
        %1297 = vmatprep.subr.mxu0 0.0
        %1298 = vmatpush1.msra.mxu0 0.0
        %1299 = vmatprep.subr.mxu0 0.0
        %1300 = vmatpush1.msra.mxu0 0.0
        %1301 = vmatprep.subr.mxu0 0.0
        %1302 = vmatpush1.msra.mxu0 0.0
        %1303 = vmatprep.subr.mxu0 0.0
        %1304 = vmatpush1.msra.mxu0 0.0
        %1305 = vmatprep.subr.mxu0 0.0
        %1306 = vmatpush1.msra.mxu0 0.0
        %1307 = vmatprep.subr.mxu0 0.0
        %1308 = vmatpush1.msra.mxu0 0.0
        %1309 = vmatprep.subr.mxu0 0.0
        %1310 = vmatpush1.msra.mxu0 0.0
        %1311 = vmatprep.subr.mxu0 0.0
        %1312 = vmatpush1.msra.mxu0 0.0
        %1313 = vmatprep.subr.mxu0 0.0
        %1314 = vmatpush1.msra.mxu0 0.0
        %1315 = vmatprep.subr.mxu0 0.0
        %1316 = vmatpush1.msra.mxu0 0.0
        %1317 = vmatprep.subr.mxu0 0.0
        %1318 = vmatpush1.msra.mxu0 0.0
        %1319 = vmatprep.subr.mxu0 0.0
        %1320 = vmatpush1.msra.mxu0 0.0
        %1321 = vmatprep.subr.mxu0 0.0
        %1322 = vmatpush1.msra.mxu0 0.0
        %1323 = vmatprep.mubr.f32.mxu0 0.0
        %1324 = vmatmul.mubr.f32.gmra.mrb[0].mxu0 %v1253
        %v1325 = vpop.f32.mrb[0].mxu0
        %v1326 = vadd.f32 0.0, %v1325
        %v1327 = vpop.f32.mrb[0].mxu0
        %v1328 = vadd.f32 0.0, %v1327
        %1329 = vdwg.mxu0
        %v1331 = vsel %vm1251, %v461, 0
        %v1333 = vsel %vm500, %v454, 0
        %v1335 = vsel %vm500, %v455, 0
        %1337 = vmatprep.subr.mxu0 %v1335
        %1338 = vmatpush1.msra.mxu0 %v1333
        %1339 = vmatprep.subr.mxu0 0.0
        %1340 = vmatpush1.msra.mxu0 0.0
        %1341 = vmatprep.subr.mxu0 0.0
        %1342 = vmatpush1.msra.mxu0 0.0
        %1343 = vmatprep.subr.mxu0 0.0
        %1344 = vmatpush1.msra.mxu0 0.0
        %1345 = vmatprep.subr.mxu0 0.0
        %1346 = vmatpush1.msra.mxu0 0.0
        %1347 = vmatprep.subr.mxu0 0.0
        %1348 = vmatpush1.msra.mxu0 0.0
        %1349 = vmatprep.subr.mxu0 0.0
        %1350 = vmatpush1.msra.mxu0 0.0
        %1351 = vmatprep.subr.mxu0 0.0
        %1352 = vmatpush1.msra.mxu0 0.0
        %1353 = vmatprep.subr.mxu0 0.0
        %1354 = vmatpush1.msra.mxu0 0.0
        %1355 = vmatprep.subr.mxu0 0.0
        %1356 = vmatpush1.msra.mxu0 0.0
        %1357 = vmatprep.subr.mxu0 0.0
        %1358 = vmatpush1.msra.mxu0 0.0
        %1359 = vmatprep.subr.mxu0 0.0
        %1360 = vmatpush1.msra.mxu0 0.0
        %1361 = vmatprep.subr.mxu0 0.0
        %1362 = vmatpush1.msra.mxu0 0.0
        %1363 = vmatprep.subr.mxu0 0.0
        %1364 = vmatpush1.msra.mxu0 0.0
        %1365 = vmatprep.subr.mxu0 0.0
        %1366 = vmatpush1.msra.mxu0 0.0
        %1367 = vmatprep.subr.mxu0 0.0
        %1368 = vmatpush1.msra.mxu0 0.0
        %1369 = vmatprep.subr.mxu0 0.0
        %1370 = vmatpush1.msra.mxu0 0.0
        %1371 = vmatprep.subr.mxu0 0.0
        %1372 = vmatpush1.msra.mxu0 0.0
        %1373 = vmatprep.subr.mxu0 0.0
        %1374 = vmatpush1.msra.mxu0 0.0
        %1375 = vmatprep.subr.mxu0 0.0
        %1376 = vmatpush1.msra.mxu0 0.0
        %1377 = vmatprep.subr.mxu0 0.0
        %1378 = vmatpush1.msra.mxu0 0.0
        %1379 = vmatprep.subr.mxu0 0.0
        %1380 = vmatpush1.msra.mxu0 0.0
        %1381 = vmatprep.subr.mxu0 0.0
        %1382 = vmatpush1.msra.mxu0 0.0
        %1383 = vmatprep.subr.mxu0 0.0
        %1384 = vmatpush1.msra.mxu0 0.0
        %1385 = vmatprep.subr.mxu0 0.0
        %1386 = vmatpush1.msra.mxu0 0.0
        %1387 = vmatprep.subr.mxu0 0.0
        %1388 = vmatpush1.msra.mxu0 0.0
        %1389 = vmatprep.subr.mxu0 0.0
        %1390 = vmatpush1.msra.mxu0 0.0
        %1391 = vmatprep.subr.mxu0 0.0
        %1392 = vmatpush1.msra.mxu0 0.0
        %1393 = vmatprep.subr.mxu0 0.0
        %1394 = vmatpush1.msra.mxu0 0.0
        %1395 = vmatprep.subr.mxu0 0.0
        %1396 = vmatpush1.msra.mxu0 0.0
        %1397 = vmatprep.subr.mxu0 0.0
        %1398 = vmatpush1.msra.mxu0 0.0
        %1399 = vmatprep.subr.mxu0 0.0
        %1400 = vmatpush1.msra.mxu0 0.0
        %1401 = vmatprep.mubr.f32.mxu0 0.0
        %1402 = vmatmul.mubr.f32.gmra.mrb[0].mxu0 %v1331
        %v1403 = vpop.f32.mrb[0].mxu0
        %v1404 = vadd.f32 %v1326, %v1403
        %v1405 = vpop.f32.mrb[0].mxu0
        %v1406 = vadd.f32 %v1328, %v1405
        %1407 = vdwg.mxu0
        %1409 = vset.pattern.permute.xlu0 0
        %1410 = vperm.xlu0 %1409, %v362
        %v1411 = vpop.permute.xlu0 %1410
        %v1413 = vadd.f32 %v1404, %v1411
        %v1414 = vadd.f32 %v1406, %v1411
        %1415 = vst [vmem:[#allocation3 + $0x8] sm:$0xff] %v1413
        %1416 = vst [vmem:[#allocation3 + $0x10] sm:$0xff] %v1414
        %v1417 = vadd.f32 %v1413, %v357
        %v1418 = vadd.f32 %v1414, %v358
        %1419 = vst [vmem:[%s350] sm:$0xff] %v1417
        %1420 = vst [vmem:[%s350 + $0x8] sm:$0xff] %v1418
        %v1421 = vld [vmem:[%s7] sm:$0xff]
        %v1422 = vld [vmem:[#allocation3] sm:$0xff]
        %v1423 = vld [vmem:[#allocation3 + $0x8] sm:$0xff]
        %v1424 = vld [vmem:[#allocation3 + $0x10] sm:$0xff]
        %1426 = vset.pattern.permute.xlu0 0
        %1427 = vperm.xlu0 %1426, %v1421
        %v1428 = vpop.permute.xlu0 %1427
        %v1430 = vmul.f32 %v1422, %v1428
        %v1431 = vmul.f32 %v1423, %v1428
        %v1432 = vmul.f32 %v1424, %v1428
        %1433 = vset.pattern.permute.xlu0 5
        %1434 = vperm.xlu0 %1433, %v1421
        %v1435 = vpop.permute.xlu0 %1434
        %v1437 = vmul.f32 %v1422, %v1435
        %v1438 = vmul.f32 %v1423, %v1435
        %v1439 = vmul.f32 %v1424, %v1435
        %1443 = vrot.lane.b32.xlu0 %v1437, 112
        %v1444 = vpop.permute.xlu0 %1443
        %1445 = vrot.lane.b32.xlu0 %v1438, 112
        %v1446 = vpop.permute.xlu0 %1445
        %1447 = vrot.lane.b32.xlu0 %v1439, 112
        %v1448 = vpop.permute.xlu0 %1447
        %v1449 = vsel %vm502, %v1444, %v1446
        %v1450 = vsel %vm502, %v1446, %v1448
        %v1454 = vadd.f32 %v1430, %v1449
        %v1455 = vadd.f32 %v1431, %v1450
        %v1456 = vadd.f32 %v1432, %v1448
        %1457 = vset.pattern.permute.xlu0 10
        %1458 = vperm.xlu0 %1457, %v1421
        %v1459 = vpop.permute.xlu0 %1458
        %v1461 = vmul.f32 %v1422, %v1459
        %v1462 = vmul.f32 %v1423, %v1459
        %v1463 = vmul.f32 %v1424, %v1459
        %1467 = vrot.lane.b32.xlu0 %v1461, 96
        %v1468 = vpop.permute.xlu0 %1467
        %1469 = vrot.lane.b32.xlu0 %v1462, 96
        %v1470 = vpop.permute.xlu0 %1469
        %1471 = vrot.lane.b32.xlu0 %v1463, 96
        %v1472 = vpop.permute.xlu0 %1471
        %v1473 = vsel %vm530, %v1468, %v1470
        %v1474 = vsel %vm530, %v1470, %v1472
        %v1478 = vadd.f32 %v1454, %v1473
        %v1479 = vadd.f32 %v1455, %v1474
        %v1480 = vadd.f32 %v1456, %v1472
        %v1481 = vld [vmem:[#allocation3 + $0x8] sm:$0xff]
        %v1482 = vld [vmem:[#allocation3 + $0x10] sm:$0xff]
        %v1483 = vld [vmem:[#allocation3 + $0x18] sm:$0xff]
        %1484 = vset.pattern.permute.xlu0 15
        %1485 = vperm.xlu0 %1484, %v1421
        %v1486 = vpop.permute.xlu0 %1485
        %v1488 = vmul.f32 %v1481, %v1486
        %v1489 = vmul.f32 %v1482, %v1486
        %v1490 = vmul.f32 %v1483, %v1486
        %1494 = vrot.lane.b32.xlu0 %v1488, 80
        %v1495 = vpop.permute.xlu0 %1494
        %1496 = vrot.lane.b32.xlu0 %v1489, 80
        %v1497 = vpop.permute.xlu0 %1496
        %1498 = vrot.lane.b32.xlu0 %v1490, 80
        %v1499 = vpop.permute.xlu0 %1498
        %v1500 = vsel %vm558, %v1495, %v1497
        %v1501 = vsel %vm558, %v1497, %v1499
        %v1505 = vadd.f32 %v1478, %v1495
        %v1506 = vadd.f32 %v1479, %v1500
        %v1507 = vadd.f32 %v1480, %v1501
        %1508 = vset.pattern.permute.xlu0 20
        %1509 = vperm.xlu0 %1508, %v1421
        %v1510 = vpop.permute.xlu0 %1509
        %v1512 = vmul.f32 %v1481, %v1510
        %v1513 = vmul.f32 %v1482, %v1510
        %v1514 = vmul.f32 %v1483, %v1510
        %1518 = vrot.lane.b32.xlu0 %v1512, 64
        %v1519 = vpop.permute.xlu0 %1518
        %1520 = vrot.lane.b32.xlu0 %v1513, 64
        %v1521 = vpop.permute.xlu0 %1520
        %1522 = vrot.lane.b32.xlu0 %v1514, 64
        %v1523 = vpop.permute.xlu0 %1522
        %v1524 = vsel %vm585, %v1519, %v1521
        %v1525 = vsel %vm585, %v1521, %v1523
        %v1529 = vadd.f32 %v1505, %v1519
        %v1530 = vadd.f32 %v1506, %v1524
        %v1531 = vadd.f32 %v1507, %v1525
        %1532 = vrot.lane.b32.xlu0 %v595, 94
        %v1533 = vpop.permute.xlu0 %1532
        %1534 = vrot.lane.b32.xlu0 %v599, 94
        %v1535 = vpop.permute.xlu0 %1534
        %v1536 = vsel %vm606, %v1533, %v1535
        %v1540 = vmul.f32 %v1529, %v1533
        %v1541 = vmul.f32 %v1530, %v1536
        %v1542 = vmul.f32 %v1531, %v1535
        %1543 = vset.pattern.permute.xlu0 1
        %1544 = vperm.xlu0 %1543, %v1421
        %v1545 = vpop.permute.xlu0 %1544
        %v1547 = vmul.f32 %v1422, %v1545
        %v1548 = vmul.f32 %v1423, %v1545
        %v1549 = vmul.f32 %v1424, %v1545
        %1550 = vset.pattern.permute.xlu0 6
        %1551 = vperm.xlu0 %1550, %v1421
        %v1552 = vpop.permute.xlu0 %1551
        %v1554 = vmul.f32 %v1422, %v1552
        %v1555 = vmul.f32 %v1423, %v1552
        %v1556 = vmul.f32 %v1424, %v1552
        %1560 = vrot.lane.b32.xlu0 %v1554, 112
        %v1561 = vpop.permute.xlu0 %1560
        %1562 = vrot.lane.b32.xlu0 %v1555, 112
        %v1563 = vpop.permute.xlu0 %1562
        %1564 = vrot.lane.b32.xlu0 %v1556, 112
        %v1565 = vpop.permute.xlu0 %1564
        %v1566 = vsel %vm502, %v1561, %v1563
        %v1567 = vsel %vm502, %v1563, %v1565
        %v1571 = vadd.f32 %v1547, %v1566
        %v1572 = vadd.f32 %v1548, %v1567
        %v1573 = vadd.f32 %v1549, %v1565
        %1574 = vset.pattern.permute.xlu0 11
        %1575 = vperm.xlu0 %1574, %v1421
        %v1576 = vpop.permute.xlu0 %1575
        %v1578 = vmul.f32 %v1422, %v1576
        %v1579 = vmul.f32 %v1423, %v1576
        %v1580 = vmul.f32 %v1424, %v1576
        %1584 = vrot.lane.b32.xlu0 %v1578, 96
        %v1585 = vpop.permute.xlu0 %1584
        %1586 = vrot.lane.b32.xlu0 %v1579, 96
        %v1587 = vpop.permute.xlu0 %1586
        %1588 = vrot.lane.b32.xlu0 %v1580, 96
        %v1589 = vpop.permute.xlu0 %1588
        %v1590 = vsel %vm530, %v1585, %v1587
        %v1591 = vsel %vm530, %v1587, %v1589
        %v1595 = vadd.f32 %v1571, %v1590
        %v1596 = vadd.f32 %v1572, %v1591
        %v1597 = vadd.f32 %v1573, %v1589
        %1598 = vset.pattern.permute.xlu0 16
        %1599 = vperm.xlu0 %1598, %v1421
        %v1600 = vpop.permute.xlu0 %1599
        %v1602 = vmul.f32 %v1481, %v1600
        %v1603 = vmul.f32 %v1482, %v1600
        %v1604 = vmul.f32 %v1483, %v1600
        %1608 = vrot.lane.b32.xlu0 %v1602, 80
        %v1609 = vpop.permute.xlu0 %1608
        %1610 = vrot.lane.b32.xlu0 %v1603, 80
        %v1611 = vpop.permute.xlu0 %1610
        %1612 = vrot.lane.b32.xlu0 %v1604, 80
        %v1613 = vpop.permute.xlu0 %1612
        %v1614 = vsel %vm558, %v1609, %v1611
        %v1615 = vsel %vm558, %v1611, %v1613
        %v1619 = vadd.f32 %v1595, %v1609
        %v1620 = vadd.f32 %v1596, %v1614
        %v1621 = vadd.f32 %v1597, %v1615
        %1622 = vset.pattern.permute.xlu0 21
        %1623 = vperm.xlu0 %1622, %v1421
        %v1624 = vpop.permute.xlu0 %1623
        %v1626 = vmul.f32 %v1481, %v1624
        %v1627 = vmul.f32 %v1482, %v1624
        %v1628 = vmul.f32 %v1483, %v1624
        %1632 = vrot.lane.b32.xlu0 %v1626, 64
        %v1633 = vpop.permute.xlu0 %1632
        %1634 = vrot.lane.b32.xlu0 %v1627, 64
        %v1635 = vpop.permute.xlu0 %1634
        %1636 = vrot.lane.b32.xlu0 %v1628, 64
        %v1637 = vpop.permute.xlu0 %1636
        %v1638 = vsel %vm585, %v1633, %v1635
        %v1639 = vsel %vm585, %v1635, %v1637
        %v1643 = vadd.f32 %v1619, %v1633
        %v1644 = vadd.f32 %v1620, %v1638
        %v1645 = vadd.f32 %v1621, %v1639
        %1646 = vrot.lane.b32.xlu0 %v738, 95
        %v1647 = vpop.permute.xlu0 %1646
        %1648 = vrot.lane.b32.xlu0 %v742, 95
        %v1649 = vpop.permute.xlu0 %1648
        %v1650 = vsel %vm749, %v1647, %v1649
        %v1654 = vmul.f32 %v1643, %v1647
        %v1655 = vmul.f32 %v1644, %v1650
        %v1656 = vmul.f32 %v1645, %v1649
        %1660 = vrot.lane.b32.xlu0 %v1654, 127
        %v1661 = vpop.permute.xlu0 %1660
        %1662 = vrot.lane.b32.xlu0 %v1655, 127
        %v1663 = vpop.permute.xlu0 %1662
        %1664 = vrot.lane.b32.xlu0 %v1656, 127
        %v1665 = vpop.permute.xlu0 %1664
        %v1666 = vsel %vm764, %v1661, %v1663
        %v1667 = vsel %vm764, %v1663, %v1665
        %v1671 = vadd.f32 %v1540, %v1666
        %v1672 = vadd.f32 %v1541, %v1667
        %v1673 = vadd.f32 %v1542, %v1665
        %1674 = vset.pattern.permute.xlu0 2
        %1675 = vperm.xlu0 %1674, %v1421
        %v1676 = vpop.permute.xlu0 %1675
        %v1678 = vmul.f32 %v1422, %v1676
        %v1679 = vmul.f32 %v1423, %v1676
        %v1680 = vmul.f32 %v1424, %v1676
        %1681 = vset.pattern.permute.xlu0 7
        %1682 = vperm.xlu0 %1681, %v1421
        %v1683 = vpop.permute.xlu0 %1682
        %v1685 = vmul.f32 %v1422, %v1683
        %v1686 = vmul.f32 %v1423, %v1683
        %v1687 = vmul.f32 %v1424, %v1683
        %1691 = vrot.lane.b32.xlu0 %v1685, 112
        %v1692 = vpop.permute.xlu0 %1691
        %1693 = vrot.lane.b32.xlu0 %v1686, 112
        %v1694 = vpop.permute.xlu0 %1693
        %1695 = vrot.lane.b32.xlu0 %v1687, 112
        %v1696 = vpop.permute.xlu0 %1695
        %v1697 = vsel %vm502, %v1692, %v1694
        %v1698 = vsel %vm502, %v1694, %v1696
        %v1702 = vadd.f32 %v1678, %v1697
        %v1703 = vadd.f32 %v1679, %v1698
        %v1704 = vadd.f32 %v1680, %v1696
        %1705 = vset.pattern.permute.xlu0 12
        %1706 = vperm.xlu0 %1705, %v1421
        %v1707 = vpop.permute.xlu0 %1706
        %v1709 = vmul.f32 %v1423, %v1707
        %v1710 = vmul.f32 %v1424, %v1707
        %1713 = vrot.lane.b32.xlu0 %v1709, 96
        %v1714 = vpop.permute.xlu0 %1713
        %1715 = vrot.lane.b32.xlu0 %v1710, 96
        %v1716 = vpop.permute.xlu0 %1715
        %v1717 = vsel %vm530, %v1714, %v1716
        %v1721 = vadd.f32 %v1702, %v1714
        %v1722 = vadd.f32 %v1703, %v1717
        %v1723 = vadd.f32 %v1704, %v1716
        %1724 = vset.pattern.permute.xlu0 17
        %1725 = vperm.xlu0 %1724, %v1421
        %v1726 = vpop.permute.xlu0 %1725
        %v1728 = vmul.f32 %v1481, %v1726
        %v1729 = vmul.f32 %v1482, %v1726
        %v1730 = vmul.f32 %v1483, %v1726
        %1734 = vrot.lane.b32.xlu0 %v1728, 80
        %v1735 = vpop.permute.xlu0 %1734
        %1736 = vrot.lane.b32.xlu0 %v1729, 80
        %v1737 = vpop.permute.xlu0 %1736
        %1738 = vrot.lane.b32.xlu0 %v1730, 80
        %v1739 = vpop.permute.xlu0 %1738
        %v1740 = vsel %vm558, %v1735, %v1737
        %v1741 = vsel %vm558, %v1737, %v1739
        %v1745 = vadd.f32 %v1721, %v1735
        %v1746 = vadd.f32 %v1722, %v1740
        %v1747 = vadd.f32 %v1723, %v1741
        %1748 = vset.pattern.permute.xlu0 22
        %1749 = vperm.xlu0 %1748, %v1421
        %v1750 = vpop.permute.xlu0 %1749
        %v1752 = vmul.f32 %v1481, %v1750
        %v1753 = vmul.f32 %v1482, %v1750
        %v1754 = vmul.f32 %v1483, %v1750
        %1758 = vrot.lane.b32.xlu0 %v1752, 64
        %v1759 = vpop.permute.xlu0 %1758
        %1760 = vrot.lane.b32.xlu0 %v1753, 64
        %v1761 = vpop.permute.xlu0 %1760
        %1762 = vrot.lane.b32.xlu0 %v1754, 64
        %v1763 = vpop.permute.xlu0 %1762
        %v1764 = vsel %vm585, %v1759, %v1761
        %v1765 = vsel %vm585, %v1761, %v1763
        %v1769 = vadd.f32 %v1745, %v1759
        %v1770 = vadd.f32 %v1746, %v1764
        %v1771 = vadd.f32 %v1747, %v1765
        %1775 = vrot.lane.b32.xlu0 %v1769, 126
        %v1776 = vpop.permute.xlu0 %1775
        %1777 = vrot.lane.b32.xlu0 %v1770, 126
        %v1778 = vpop.permute.xlu0 %1777
        %1779 = vrot.lane.b32.xlu0 %v1771, 126
        %v1780 = vpop.permute.xlu0 %1779
        %v1781 = vsel %vm897, %v1776, %v1778
        %v1782 = vsel %vm897, %v1778, %v1780
        %v1786 = vadd.f32 %v1671, %v1781
        %v1787 = vadd.f32 %v1672, %v1782
        %v1788 = vadd.f32 %v1673, %v1780
        %1789 = vset.pattern.permute.xlu0 3
        %1790 = vperm.xlu0 %1789, %v1421
        %v1791 = vpop.permute.xlu0 %1790
        %v1793 = vmul.f32 %v1422, %v1791
        %v1794 = vmul.f32 %v1423, %v1791
        %v1795 = vmul.f32 %v1424, %v1791
        %1796 = vset.pattern.permute.xlu0 8
        %1797 = vperm.xlu0 %1796, %v1421
        %v1798 = vpop.permute.xlu0 %1797
        %v1800 = vmul.f32 %v1422, %v1798
        %v1801 = vmul.f32 %v1423, %v1798
        %v1802 = vmul.f32 %v1424, %v1798
        %1806 = vrot.lane.b32.xlu0 %v1800, 112
        %v1807 = vpop.permute.xlu0 %1806
        %1808 = vrot.lane.b32.xlu0 %v1801, 112
        %v1809 = vpop.permute.xlu0 %1808
        %1810 = vrot.lane.b32.xlu0 %v1802, 112
        %v1811 = vpop.permute.xlu0 %1810
        %v1812 = vsel %vm502, %v1807, %v1809
        %v1813 = vsel %vm502, %v1809, %v1811
        %v1817 = vadd.f32 %v1793, %v1812
        %v1818 = vadd.f32 %v1794, %v1813
        %v1819 = vadd.f32 %v1795, %v1811
        %1820 = vset.pattern.permute.xlu0 13
        %1821 = vperm.xlu0 %1820, %v1421
        %v1822 = vpop.permute.xlu0 %1821
        %v1824 = vmul.f32 %v1481, %v1822
        %v1825 = vmul.f32 %v1482, %v1822
        %v1826 = vmul.f32 %v1483, %v1822
        %1830 = vrot.lane.b32.xlu0 %v1824, 96
        %v1831 = vpop.permute.xlu0 %1830
        %1832 = vrot.lane.b32.xlu0 %v1825, 96
        %v1833 = vpop.permute.xlu0 %1832
        %1834 = vrot.lane.b32.xlu0 %v1826, 96
        %v1835 = vpop.permute.xlu0 %1834
        %v1836 = vsel %vm530, %v1831, %v1833
        %v1837 = vsel %vm530, %v1833, %v1835
        %v1841 = vadd.f32 %v1817, %v1831
        %v1842 = vadd.f32 %v1818, %v1836
        %v1843 = vadd.f32 %v1819, %v1837
        %1844 = vset.pattern.permute.xlu0 18
        %1845 = vperm.xlu0 %1844, %v1421
        %v1846 = vpop.permute.xlu0 %1845
        %v1848 = vmul.f32 %v1481, %v1846
        %v1849 = vmul.f32 %v1482, %v1846
        %v1850 = vmul.f32 %v1483, %v1846
        %1854 = vrot.lane.b32.xlu0 %v1848, 80
        %v1855 = vpop.permute.xlu0 %1854
        %1856 = vrot.lane.b32.xlu0 %v1849, 80
        %v1857 = vpop.permute.xlu0 %1856
        %1858 = vrot.lane.b32.xlu0 %v1850, 80
        %v1859 = vpop.permute.xlu0 %1858
        %v1860 = vsel %vm558, %v1855, %v1857
        %v1861 = vsel %vm558, %v1857, %v1859
        %v1865 = vadd.f32 %v1841, %v1855
        %v1866 = vadd.f32 %v1842, %v1860
        %v1867 = vadd.f32 %v1843, %v1861
        %1868 = vset.pattern.permute.xlu0 23
        %1869 = vperm.xlu0 %1868, %v1421
        %v1870 = vpop.permute.xlu0 %1869
        %v1872 = vmul.f32 %v1481, %v1870
        %v1873 = vmul.f32 %v1482, %v1870
        %v1874 = vmul.f32 %v1483, %v1870
        %1878 = vrot.lane.b32.xlu0 %v1872, 64
        %v1879 = vpop.permute.xlu0 %1878
        %1880 = vrot.lane.b32.xlu0 %v1873, 64
        %v1881 = vpop.permute.xlu0 %1880
        %1882 = vrot.lane.b32.xlu0 %v1874, 64
        %v1883 = vpop.permute.xlu0 %1882
        %v1884 = vsel %vm585, %v1879, %v1881
        %v1885 = vsel %vm585, %v1881, %v1883
        %v1889 = vadd.f32 %v1865, %v1879
        %v1890 = vadd.f32 %v1866, %v1884
        %v1891 = vadd.f32 %v1867, %v1885
        %1892 = vrot.lane.b32.xlu0 %v1024, 97
        %v1893 = vpop.permute.xlu0 %1892
        %1894 = vrot.lane.b32.xlu0 %v1028, 97
        %v1895 = vpop.permute.xlu0 %1894
        %v1896 = vsel %vm1035, %v1893, %v1895
        %v1900 = vmul.f32 %v1889, %v1893
        %v1901 = vmul.f32 %v1890, %v1896
        %v1902 = vmul.f32 %v1891, %v1895
        %1906 = vrot.lane.b32.xlu0 %v1900, 125
        %v1907 = vpop.permute.xlu0 %1906
        %1908 = vrot.lane.b32.xlu0 %v1901, 125
        %v1909 = vpop.permute.xlu0 %1908
        %1910 = vrot.lane.b32.xlu0 %v1902, 125
        %v1911 = vpop.permute.xlu0 %1910
        %v1912 = vsel %vm1050, %v1907, %v1909
        %v1913 = vsel %vm1050, %v1909, %v1911
        %v1917 = vadd.f32 %v1786, %v1912
        %v1918 = vadd.f32 %v1787, %v1913
        %v1919 = vadd.f32 %v1788, %v1911
        %1920 = vset.pattern.permute.xlu0 4
        %1921 = vperm.xlu0 %1920, %v1421
        %v1922 = vpop.permute.xlu0 %1921
        %v1924 = vmul.f32 %v1422, %v1922
        %v1925 = vmul.f32 %v1423, %v1922
        %v1926 = vmul.f32 %v1424, %v1922
        %1927 = vset.pattern.permute.xlu0 9
        %1928 = vperm.xlu0 %1927, %v1421
        %v1929 = vpop.permute.xlu0 %1928
        %v1931 = vmul.f32 %v1422, %v1929
        %v1932 = vmul.f32 %v1423, %v1929
        %v1933 = vmul.f32 %v1424, %v1929
        %1937 = vrot.lane.b32.xlu0 %v1931, 112
        %v1938 = vpop.permute.xlu0 %1937
        %1939 = vrot.lane.b32.xlu0 %v1932, 112
        %v1940 = vpop.permute.xlu0 %1939
        %1941 = vrot.lane.b32.xlu0 %v1933, 112
        %v1942 = vpop.permute.xlu0 %1941
        %v1943 = vsel %vm502, %v1938, %v1940
        %v1944 = vsel %vm502, %v1940, %v1942
        %v1948 = vadd.f32 %v1924, %v1943
        %v1949 = vadd.f32 %v1925, %v1944
        %v1950 = vadd.f32 %v1926, %v1942
        %1951 = vset.pattern.permute.xlu0 14
        %1952 = vperm.xlu0 %1951, %v1421
        %v1953 = vpop.permute.xlu0 %1952
        %v1955 = vmul.f32 %v1481, %v1953
        %v1956 = vmul.f32 %v1482, %v1953
        %v1957 = vmul.f32 %v1483, %v1953
        %1961 = vrot.lane.b32.xlu0 %v1955, 96
        %v1962 = vpop.permute.xlu0 %1961
        %1963 = vrot.lane.b32.xlu0 %v1956, 96
        %v1964 = vpop.permute.xlu0 %1963
        %1965 = vrot.lane.b32.xlu0 %v1957, 96
        %v1966 = vpop.permute.xlu0 %1965
        %v1967 = vsel %vm530, %v1962, %v1964
        %v1968 = vsel %vm530, %v1964, %v1966
        %v1972 = vadd.f32 %v1948, %v1962
        %v1973 = vadd.f32 %v1949, %v1967
        %v1974 = vadd.f32 %v1950, %v1968
        %1975 = vset.pattern.permute.xlu0 19
        %1976 = vperm.xlu0 %1975, %v1421
        %v1977 = vpop.permute.xlu0 %1976
        %v1979 = vmul.f32 %v1481, %v1977
        %v1980 = vmul.f32 %v1482, %v1977
        %v1981 = vmul.f32 %v1483, %v1977
        %1985 = vrot.lane.b32.xlu0 %v1979, 80
        %v1986 = vpop.permute.xlu0 %1985
        %1987 = vrot.lane.b32.xlu0 %v1980, 80
        %v1988 = vpop.permute.xlu0 %1987
        %1989 = vrot.lane.b32.xlu0 %v1981, 80
        %v1990 = vpop.permute.xlu0 %1989
        %v1991 = vsel %vm558, %v1986, %v1988
        %v1992 = vsel %vm558, %v1988, %v1990
        %v1996 = vadd.f32 %v1972, %v1986
        %v1997 = vadd.f32 %v1973, %v1991
        %v1998 = vadd.f32 %v1974, %v1992
        %1999 = vset.pattern.permute.xlu0 24
        %2000 = vperm.xlu0 %1999, %v1421
        %v2001 = vpop.permute.xlu0 %2000
        %v2003 = vmul.f32 %v1481, %v2001
        %v2004 = vmul.f32 %v1482, %v2001
        %v2005 = vmul.f32 %v1483, %v2001
        %2009 = vrot.lane.b32.xlu0 %v2003, 64
        %v2010 = vpop.permute.xlu0 %2009
        %2011 = vrot.lane.b32.xlu0 %v2004, 64
        %v2012 = vpop.permute.xlu0 %2011
        %2013 = vrot.lane.b32.xlu0 %v2005, 64
        %v2014 = vpop.permute.xlu0 %2013
        %v2015 = vsel %vm585, %v2010, %v2012
        %v2016 = vsel %vm585, %v2012, %v2014
        %v2020 = vadd.f32 %v1996, %v2010
        %v2021 = vadd.f32 %v1997, %v2015
        %v2022 = vadd.f32 %v1998, %v2016
        %2023 = vrot.lane.b32.xlu0 %v1181, 98
        %v2024 = vpop.permute.xlu0 %2023
        %2025 = vrot.lane.b32.xlu0 %v1185, 98
        %v2026 = vpop.permute.xlu0 %2025
        %v2027 = vsel %vm1192, %v2024, %v2026
        %v2031 = vmul.f32 %v2020, %v2024
        %v2032 = vmul.f32 %v2021, %v2027
        %v2033 = vmul.f32 %v2022, %v2026
        %2037 = vrot.lane.b32.xlu0 %v2031, 124
        %v2038 = vpop.permute.xlu0 %2037
        %2039 = vrot.lane.b32.xlu0 %v2032, 124
        %v2040 = vpop.permute.xlu0 %2039
        %2041 = vrot.lane.b32.xlu0 %v2033, 124
        %v2042 = vpop.permute.xlu0 %2041
        %v2043 = vsel %vm1207, %v2038, %v2040
        %v2044 = vsel %vm1207, %v2040, %v2042
        %v2048 = vadd.f32 %v1917, %v2043
        %v2049 = vadd.f32 %v1918, %v2044
        %v2050 = vadd.f32 %v1919, %v2042
        %2051 = vset.pattern.permute.xlu0 1
        %2052 = vperm.xlu0 %2051, %v362
        %v2053 = vpop.permute.xlu0 %2052
        %v2055 = vadd.f32 %v2048, %v2053
        %v2056 = vadd.f32 %v2049, %v2053
        %v2057 = vadd.f32 %v2050, %v2053
        %2060 = vrot.lane.b32.xlu0 %v359, 94
        %v2061 = vpop.permute.xlu0 %2060
        %2062 = vrot.lane.b32.xlu0 %v360, 94
        %v2063 = vpop.permute.xlu0 %2062
        %v2064 = vsel %vm606, %v2061, %v2063
        %v2068 = vadd.f32 %v2055, %v2061
        %v2069 = vadd.f32 %v2056, %v2064
        %v2070 = vadd.f32 %v2057, %v2063
        %2074 = vrot.lane.b32.xlu0 %v2068, 34
        %v2075 = vpop.permute.xlu0 %2074
        %2076 = vrot.lane.b32.xlu0 %v2069, 34
        %v2077 = vpop.permute.xlu0 %2076
        %2078 = vrot.lane.b32.xlu0 %v2070, 34
        %v2079 = vpop.permute.xlu0 %2078
        %v2080 = vsel %vm1248, %v2075, %v2077
        %v2081 = vsel %vm1248, %v2077, %v2079
        %2084 = vst [vmem:[%s350 + $0x10] sm:$0xff] %v2080
        %2085 = vst [vmem:[%s350 + $0x18] sm:$0xff] %v2081
        %s2086 = sand.u32 %s228, 1
        %s2087 = scalar_lea.sflag [#allocation6], %s2086
        %s2088 = sand.u32 %s228, 1
        %s2089 = smul.addr %s2088, 32
        %s2090 = scalar_lea.vmem [#allocation7], %s2089
        // Predicated region
        $region61: #{tpu_custom_call.1} parent=55 // pred_check
          %p2091 = pneg %p238
        $region62: #{tpu_custom_call.1} parent=55 // pred_check_branch
          %2093 = sbr.rel (%p2091) target = $region64
        $region63: #{tpu_custom_call.1} parent=55 // pred_region
          %s2095 = ssub.s32 512, 512
          %2096 = vsyncadd %s2087, %s2095
          %s2097 = smul.addr %s26, 4
          %s2098 = smul.addr %s2097, 128
          %s2099 = scalar_lea.hbm %s9, %s2098
          %s2100 = sshll.u32 %s2090, 4
          %s2101 = int_to_ptr.vmem [resolvable:$true] %s2100
          %2106 = dma.vmem_to_hbm [thread:$0]  %s2101, 512, %s2099, %s2087, 256, 256, 16
        $region64: #{tpu_custom_call.1} parent=55 // pred_fallthru
          _
      $region56: #{tpu_custom_call.1} parent=5 // pred_fallthru
        _
      %p2107 = scmp.le.s32.totalorder 2, %s21
      // Predicated region
      $region65: #{tpu_custom_call.1} parent=5 // pred_check
        %p2108 = pneg %p2107
      $region66: #{tpu_custom_call.1} parent=5 // pred_check_branch
        %2110 = sbr.rel (%p2108) target = $region68
      $region67: #{tpu_custom_call.1} parent=5 // pred_region
        %s2111 = ssub.s32 %s21, 2
        // Predicated region
        $region69: #{tpu_custom_call.1} parent=67 // pred_check
          %p2112 = pneg %p244
        $region70: #{tpu_custom_call.1} parent=67 // pred_check_branch
          %2114 = sbr.rel (%p2112) target = $region72
        $region71: #{tpu_custom_call.1} parent=67 // pred_region
          %s2115 = sand.u32 %s229, 1
          %s2116 = scalar_lea.sflag [#allocation6], %s2115
          %s2117 = sand.u32 %s229, 1
          %s2118 = smul.addr %s2117, 32
          %s2119 = scalar_lea.vmem [#allocation7], %s2118
          %2120 = dma.done %s2116, 512
        $region72: #{tpu_custom_call.1} parent=67 // pred_fallthru
          _
      $region68: #{tpu_custom_call.1} parent=5 // pred_fallthru
        _
    $region6: #{tpu_custom_call.1} parent=1 // loop_footer
      %s25 = sadd.s32 1, %s21
    $region7: #{tpu_custom_call.1} parent=1 // loop_footer_branch
      %20 = sbr.rel target = $region3
    $region8: #{tpu_custom_call.1} parent=1 // loop_exit
      _
    %2121 = vsyncpa [#allocation5], 1
    %s2122 = scalar_lea.sflag [#allocation5], 1
    %2123 = vsyncpa %s2122, 1
    %2124 = vsyncpa [#allocation6], 1
    %s2125 = scalar_lea.sflag [#allocation6], 1
    %2126 = vsyncpa %s2125, 1

</llo_original>
